<compile_context>
chip_gen: v7x
topology: tpu7x:2x2x1
jax: 0.10.0
libtpu: 0.0.40
codegen_flags: <defaults>
</compile_context>

<pallas_src>
import functools

import jax
import jax.numpy as jnp
from jax.experimental import pallas as pl
from jax.experimental.pallas import tpu as pltpu


# ----------------------------- Pallas kernels ------------------------------

def _conv1_kernel(p_ref, w_ref, b_ref, o_ref):
    # p: (M, 192) bf16  w: (192, 128) bf16 (OC zero-padded 32->128)  b: (1,128) f32
    y = jnp.dot(p_ref[...], w_ref[...], preferred_element_type=jnp.float32)
    y = jnp.maximum(y + b_ref[...], 0.0)
    o_ref[...] = y.astype(o_ref.dtype)


def _tail_kernel(p2_ref, goal_ref, w2_ref, b2_ref, w3_ref, b3_ref,
                 wh1_ref, bh1_ref, wh2_ref, bh2_ref, o_ref,
                 *, num_actions, b_pad, n_pos):
    """Fused conv2 + conv3 + dueling head.

    p2:   (n_pos*b_pad, 512) bf16  conv2 im2col patches, rows ordered (pos, b)
    goal: (b_pad, 64)        bf16  goal in cols 0..2, zeros elsewhere
    w2:   (512, 64)  bf16          rows ordered (kh, kw, ic)
    w3:   (n_pos*64, 64) bf16      rows ordered (kh, kw, ic)
    wh1:  (128, 1024) bf16         [wa1 | wv1]; rows 0..63 conv feats, 64..66 goal
    wh2:  (1024, 128) bf16         block-diag [wa2 ; wv2]; cols <NA adv, col NA val
    o:    (b_pad, 128) f32         q (padded); wrapper slices [:B, :NA]
    """
    # ---- conv2: one matmul covering all 3x3 positions and the padded batch ----
    h2 = jnp.dot(p2_ref[...], w2_ref[...], preferred_element_type=jnp.float32)
    h2 = jnp.maximum(h2 + b2_ref[...], 0.0).astype(jnp.bfloat16)   # (n_pos*b_pad, 64)

    # ---- conv3 (3x3 stride 1 on a 3x3 map -> 1x1): sum of per-position matmuls.
    # h2 rows are position-major, so every slice below is a vreg-aligned 8-row slab.
    acc = jnp.zeros((b_pad, 64), jnp.float32)
    for p in range(n_pos):
        acc = acc + jnp.dot(h2[p * b_pad:(p + 1) * b_pad, :],
                            w3_ref[p * 64:(p + 1) * 64, :],
                            preferred_element_type=jnp.float32)
    h3 = jnp.maximum(acc + b3_ref[...], 0.0)                        # (b_pad, 64) f32

    # ---- dueling head: adv & val branches merged into two matmuls ------------
    # hidden = relu([conv_feats | goal] @ Wh1 + b); done as two K=64 dots so no
    # in-kernel concatenation is needed (Wh1 rows 0..63 conv, rows 64.. goal/pad).
    hid = (jnp.dot(h3.astype(jnp.bfloat16), wh1_ref[0:64, :],
                   preferred_element_type=jnp.float32)
           + jnp.dot(goal_ref[...], wh1_ref[64:128, :],
                     preferred_element_type=jnp.float32)
           + bh1_ref[...])
    hid = jnp.maximum(hid, 0.0).astype(jnp.bfloat16)                # (b_pad, 1024)

    out = jnp.dot(hid, wh2_ref[...], preferred_element_type=jnp.float32)
    out = out + bh2_ref[...]        # (b_pad, 128): cols <NA adv, col NA val, rest 0

    lane = jax.lax.broadcasted_iota(jnp.int32, out.shape, 1)
    adv_sum = jnp.sum(jnp.where(lane < num_actions, out, 0.0), axis=1, keepdims=True)
    val = jnp.sum(jnp.where(lane == num_actions, out, 0.0), axis=1, keepdims=True)
    # q = val + adv - mean(adv); valid in cols < num_actions (wrapper slices them).
    o_ref[...] = out + val - adv_sum * (1.0 / num_actions)


def _vmem_specs(n):
    return [pl.BlockSpec(memory_space=pltpu.MemorySpace.VMEM)] * n


def conv1_matmul(p1, w1, b1):
    m, n = p1.shape[0], w1.shape[1]
    return pl.pallas_call(
        _conv1_kernel,
        out_shape=jax.ShapeDtypeStruct((m, n), jnp.bfloat16),
        in_specs=_vmem_specs(3),
        out_specs=pl.BlockSpec(memory_space=pltpu.MemorySpace.VMEM),
    )(p1, w1, b1)


def tail_fused(p2, goal_pad, kp, *, num_actions, b_pad, n_pos):
    return pl.pallas_call(
        functools.partial(_tail_kernel, num_actions=num_actions,
                          b_pad=b_pad, n_pos=n_pos),
        out_shape=jax.ShapeDtypeStruct((b_pad, 128), jnp.float32),
        in_specs=_vmem_specs(10),
        out_specs=pl.BlockSpec(memory_space=pltpu.MemorySpace.VMEM),
    )(p2, goal_pad, kp["w2"], kp["b2"], kp["w3"], kp["b3"],
      kp["wh1"], kp["bh1"], kp["wh2"], kp["bh2"])


# ----------------------------- JAX glue (no gathers) ------------------------

def _im2col(x, k, stride):
    """x: (B,H,W,C) -> (B*OH*OW, k*k*C).  Static strided slices only.
    Rows ordered (b, oy, ox); features ordered (kh, kw, c)."""
    B, H, W, C = x.shape
    oh = (H - k) // stride + 1
    ow = (W - k) // stride + 1
    taps = []
    for dy in range(k):
        for dx in range(k):
            taps.append(x[:, dy:dy + stride * (oh - 1) + 1:stride,
                          dx:dx + stride * (ow - 1) + 1:stride, :])   # (B,oh,ow,C)
    pat = jnp.stack(taps, axis=3)                                     # (B,oh,ow,k*k,C)
    return pat.reshape(B * oh * ow, k * k * C), oh, ow


def _im2col_posmajor(x, k, stride, b_pad):
    """x: (B,H,W,C) -> (OH*OW*b_pad, k*k*C), rows ordered (pos, b) with the
    batch zero-padded to b_pad so every position is an 8-row (vreg) slab."""
    B, H, W, C = x.shape
    oh = (H - k) // stride + 1
    ow = (W - k) // stride + 1
    xp = jnp.pad(x, ((0, b_pad - B), (0, 0), (0, 0), (0, 0)))
    rows = []
    for oy in range(oh):
        for ox in range(ow):
            patch = xp[:, oy * stride:oy * stride + k,
                       ox * stride:ox * stride + k, :]                # (b_pad,k,k,C)
            rows.append(patch.reshape(b_pad, k * k * C))
    return jnp.concatenate(rows, axis=0), oh, ow


def init_torch_params(key, input_shape, num_actions):
    """Random params in PyTorch layouts (Conv2d: (OC,IC,KH,KW); Linear: (out,in))."""
    c = input_shape[0]
    conv_out_size = 64          # final conv map is 1x1x64 for the 36x36 input used here
    fc_in = conv_out_size + 3
    ks = jax.random.split(key, 14)
    s = 0.05
    nrm = lambda k, shape: (s * jax.random.normal(k, shape)).astype(jnp.float32)
    return {
        "conv1_w": nrm(ks[0], (32, c, 8, 8)),     "conv1_b": nrm(ks[1], (32,)),
        "conv2_w": nrm(ks[2], (64, 32, 4, 4)),    "conv2_b": nrm(ks[3], (64,)),
        "conv3_w": nrm(ks[4], (64, 64, 3, 3)),    "conv3_b": nrm(ks[5], (64,)),
        "adv1_w": nrm(ks[6], (512, fc_in)),       "adv1_b": nrm(ks[7], (512,)),
        "adv2_w": nrm(ks[8], (num_actions, 512)), "adv2_b": nrm(ks[9], (num_actions,)),
        "val1_w": nrm(ks[10], (512, fc_in)),      "val1_b": nrm(ks[11], (512,)),
        "val2_w": nrm(ks[12], (1, 512)),          "val2_b": nrm(ks[13], (1,)),
    }


def pack_params(tp, num_actions, wdtype=jnp.bfloat16):
    """PyTorch-layout params -> fused / padded kernel-layout params (done once)."""
    def conv_w(w):   # (OC,IC,KH,KW) -> (KH*KW*IC, OC), matching the patch order
        return jnp.transpose(w, (2, 3, 1, 0)).reshape(-1, w.shape[0])

    na = num_actions
    fc_in = tp["adv1_w"].shape[1]                 # conv_out_size + 3 (= 67 here)

    w1 = jnp.pad(conv_w(tp["conv1_w"]), ((0, 0), (0, 128 - 32)))    # (192, 128)
    b1 = jnp.pad(tp["conv1_b"], (0, 128 - 32)).reshape(1, 128)

    # Head branch merge:  Wh1 = [wa1 | wv1] with K padded 67 -> 128.
    wh1 = jnp.zeros((128, 1024), jnp.float32)
    wh1 = wh1.at[:fc_in, :512].set(tp["adv1_w"].T)
    wh1 = wh1.at[:fc_in, 512:].set(tp["val1_w"].T)
    bh1 = jnp.concatenate([tp["adv1_b"], tp["val1_b"]]).reshape(1, 1024)

    # Wh2 = block-diag([wa2, wv2]) padded to 128 lane-dense output columns.
    wh2 = jnp.zeros((1024, 128), jnp.float32)
    wh2 = wh2.at[:512, :na].set(tp["adv2_w"].T)
    wh2 = wh2.at[512:, na:na + 1].set(tp["val2_w"].T)
    bh2 = jnp.zeros((1, 128), jnp.float32)
    bh2 = bh2.at[0, :na].set(tp["adv2_b"])
    bh2 = bh2.at[0, na].set(tp["val2_b"][0])

    return {
        "w1": w1.astype(wdtype), "b1": b1,
        "w2": conv_w(tp["conv2_w"]).astype(wdtype), "b2": tp["conv2_b"].reshape(1, 64),
        "w3": conv_w(tp["conv3_w"]).astype(wdtype), "b3": tp["conv3_b"].reshape(1, 64),
        "wh1": wh1.astype(wdtype), "bh1": bh1,
        "wh2": wh2.astype(wdtype), "bh2": bh2,
    }


def dueling_dqn_forward(kp, state_and_goal, *, num_actions):
    """Matches DuelingDQN.forward: 3 convs -> flatten -> cat(goal) -> dueling head."""
    B = state_and_goal.shape[0]
    b_pad = max(8, -(-B // 8) * 8)

    state = state_and_goal[:, 0:3, :, :]                         # (B,3,H,W)
    goal = state_and_goal[:, -1, 0, :3]                          # (B,3), as in the torch code

    x = jnp.transpose(state, (0, 2, 3, 1)).astype(jnp.bfloat16)  # NHWC
    p1, oh1, ow1 = _im2col(x, 8, 4)                              # (B*64, 192)
    h1 = conv1_matmul(p1, kp["w1"], kp["b1"])                    # (B*64, 128) bf16
    h1 = h1[:, :32].reshape(B, oh1, ow1, 32)                     # drop OC padding, NHWC

    p2, oh2, ow2 = _im2col_posmajor(h1, 4, 2, b_pad)             # (9*b_pad, 512)
    assert (oh2, ow2) == (3, 3), "fused tail kernel expects the 3x3 -> 1x1 conv tail"

    goal_pad = jnp.zeros((b_pad, 64), jnp.bfloat16)
    goal_pad = goal_pad.at[:B, :3].set(goal.astype(jnp.bfloat16))

    q = tail_fused(p2, goal_pad, kp, num_actions=num_actions,
                   b_pad=b_pad, n_pos=oh2 * ow2)                 # (b_pad,128) f32
    return q[:B, :num_actions]


# ----------------------------- main -----------------------------------------

if __name__ == "__main__":
    B, H, W = 2, 36, 36          # smallest spatial size that survives the conv stack (-> 1x1x64)
    num_actions = 4
    input_shape = (3, H, W)      # channels seen by the conv stack

    key = jax.random.PRNGKey(0)
    k_in, k_par = jax.random.split(key)
    state_and_goal = jax.random.normal(k_in, (B, 4, H, W), dtype=jnp.float32)
    torch_params = init_torch_params(k_par, input_shape, num_actions)
    kparams = pack_params(torch_params, num_actions)

    fwd = jax.jit(functools.partial(dueling_dqn_forward, num_actions=num_actions))
    q = jax.block_until_ready(fwd(kparams, state_and_goal))
    assert q.shape == (B, num_actions) and q.dtype == jnp.float32
    print("KERNEL_OK")
</pallas_src>

<mosaic_0001>
module attributes {stable_mosaic.version = 11 : i64} {
  func.func @_conv1_kernel(%arg0: memref<128x192xbf16, #tpu.memory_space<vmem>>, %arg1: memref<192x128xbf16, #tpu.memory_space<vmem>>, %arg2: memref<1x128xf32, #tpu.memory_space<vmem>>, %arg3: memref<128x128xbf16, #tpu.memory_space<vmem>>) attributes {dimension_semantics = [], scalar_prefetch = 0 : i64, scratch_operands = 0 : i64, tpu.core_type = #tpu.core_type<tc>} {
    %c0 = arith.constant 0 : index
    %c0_0 = arith.constant 0 : index
    %0 = vector.load %arg0[%c0, %c0_0] : memref<128x192xbf16, #tpu.memory_space<vmem>>, vector<128x192xbf16>
    %c0_1 = arith.constant 0 : index
    %c0_2 = arith.constant 0 : index
    %1 = vector.load %arg1[%c0_1, %c0_2] : memref<192x128xbf16, #tpu.memory_space<vmem>>, vector<192x128xbf16>
    %cst = arith.constant dense<0.000000e+00> : vector<128x128xf32>
    %2 = tpu.matmul %0, %1, %cst {dimension_numbers = #tpu.dot_dimension_numbers<[1], [0], [0], [1], [0, 0, 1, 1], [], []>} : vector<128x192xbf16>, vector<192x128xbf16>, vector<128x128xf32> -> vector<128x128xf32>
    %c0_3 = arith.constant 0 : index
    %c0_4 = arith.constant 0 : index
    %3 = vector.load %arg2[%c0_3, %c0_4] : memref<1x128xf32, #tpu.memory_space<vmem>>, vector<1x128xf32>
    %4 = vector.broadcast %3 : vector<1x128xf32> to vector<128x128xf32>
    %5 = arith.addf %2, %4 : vector<128x128xf32>
    %cst_5 = arith.constant 0.000000e+00 : f32
    %6 = vector.broadcast %cst_5 : f32 to vector<128x128xf32>
    %7 = arith.maximumf %5, %6 : vector<128x128xf32>
    %8 = arith.truncf %7 : vector<128x128xf32> to vector<128x128xbf16>
    %c0_6 = arith.constant 0 : index
    %c0_7 = arith.constant 0 : index
    %9 = vector.load %arg3[%c0_6, %c0_7] : memref<128x128xbf16, #tpu.memory_space<vmem>>, vector<128x128xbf16>
    tpu.vector_store %arg3[%c0_6, %c0_7], %8 {strides = array<i32>} : memref<128x128xbf16, #tpu.memory_space<vmem>>, vector<128x128xbf16>,
    return
  }
}

module attributes {stable_mosaic.version = 11 : i64} {
  func.func @_tail_kernel(%arg0: memref<72x512xbf16, #tpu.memory_space<vmem>>, %arg1: memref<8x64xbf16, #tpu.memory_space<vmem>>, %arg2: memref<512x64xbf16, #tpu.memory_space<vmem>>, %arg3: memref<1x64xf32, #tpu.memory_space<vmem>>, %arg4: memref<576x64xbf16, #tpu.memory_space<vmem>>, %arg5: memref<1x64xf32, #tpu.memory_space<vmem>>, %arg6: memref<128x1024xbf16, #tpu.memory_space<vmem>>, %arg7: memref<1x1024xf32, #tpu.memory_space<vmem>>, %arg8: memref<1024x128xbf16, #tpu.memory_space<vmem>>, %arg9: memref<1x128xf32, #tpu.memory_space<vmem>>, %arg10: memref<8x128xf32, #tpu.memory_space<vmem>>) attributes {dimension_semantics = [], scalar_prefetch = 0 : i64, scratch_operands = 0 : i64, tpu.core_type = #tpu.core_type<tc>} {
    %c0 = arith.constant 0 : index
    %c0_0 = arith.constant 0 : index
    %0 = vector.load %arg0[%c0, %c0_0] : memref<72x512xbf16, #tpu.memory_space<vmem>>, vector<72x512xbf16>
    %c0_1 = arith.constant 0 : index
    %c0_2 = arith.constant 0 : index
    %1 = vector.load %arg2[%c0_1, %c0_2] : memref<512x64xbf16, #tpu.memory_space<vmem>>, vector<512x64xbf16>
    %cst = arith.constant dense<0.000000e+00> : vector<72x64xf32>
    %2 = tpu.matmul %0, %1, %cst {dimension_numbers = #tpu.dot_dimension_numbers<[1], [0], [0], [1], [0, 0, 1, 1], [], []>} : vector<72x512xbf16>, vector<512x64xbf16>, vector<72x64xf32> -> vector<72x64xf32>
    %c0_3 = arith.constant 0 : index
    %c0_4 = arith.constant 0 : index
    %3 = vector.load %arg3[%c0_3, %c0_4] : memref<1x64xf32, #tpu.memory_space<vmem>>, vector<1x64xf32>
    %4 = vector.broadcast %3 : vector<1x64xf32> to vector<72x64xf32>
    %5 = arith.addf %2, %4 : vector<72x64xf32>
    %cst_5 = arith.constant 0.000000e+00 : f32
    %6 = vector.broadcast %cst_5 : f32 to vector<72x64xf32>
    %7 = arith.maximumf %5, %6 : vector<72x64xf32>
    %8 = arith.truncf %7 : vector<72x64xf32> to vector<72x64xbf16>
    %cst_6 = arith.constant 0.000000e+00 : f32
    %9 = vector.broadcast %cst_6 : f32 to vector<8x64xf32>
    %10 = vector.extract_strided_slice %8 {offsets = [0, 0], sizes = [8, 64], strides = [1, 1]} : vector<72x64xbf16> to vector<8x64xbf16>
    %c0_7 = arith.constant 0 : index
    %c0_8 = arith.constant 0 : index
    %11 = vector.load %arg4[%c0_7, %c0_8] : memref<576x64xbf16, #tpu.memory_space<vmem>>, vector<64x64xbf16>
    %cst_9 = arith.constant dense<0.000000e+00> : vector<8x64xf32>
    %12 = tpu.matmul %10, %11, %cst_9 {dimension_numbers = #tpu.dot_dimension_numbers<[1], [0], [0], [1], [0, 0, 1, 1], [], []>} : vector<8x64xbf16>, vector<64x64xbf16>, vector<8x64xf32> -> vector<8x64xf32>
    %13 = arith.addf %9, %12 : vector<8x64xf32>
    %14 = vector.extract_strided_slice %8 {offsets = [8, 0], sizes = [8, 64], strides = [1, 1]} : vector<72x64xbf16> to vector<8x64xbf16>
    %c64 = arith.constant 64 : index
    %c0_10 = arith.constant 0 : index
    %15 = vector.load %arg4[%c64, %c0_10] : memref<576x64xbf16, #tpu.memory_space<vmem>>, vector<64x64xbf16>
    %cst_11 = arith.constant dense<0.000000e+00> : vector<8x64xf32>
    %16 = tpu.matmul %14, %15, %cst_11 {dimension_numbers = #tpu.dot_dimension_numbers<[1], [0], [0], [1], [0, 0, 1, 1], [], []>} : vector<8x64xbf16>, vector<64x64xbf16>, vector<8x64xf32> -> vector<8x64xf32>
    %17 = arith.addf %13, %16 : vector<8x64xf32>
    %18 = vector.extract_strided_slice %8 {offsets = [16, 0], sizes = [8, 64], strides = [1, 1]} : vector<72x64xbf16> to vector<8x64xbf16>
    %c128 = arith.constant 128 : index
    %c0_12 = arith.constant 0 : index
    %19 = vector.load %arg4[%c128, %c0_12] : memref<576x64xbf16, #tpu.memory_space<vmem>>, vector<64x64xbf16>
    %cst_13 = arith.constant dense<0.000000e+00> : vector<8x64xf32>
    %20 = tpu.matmul %18, %19, %cst_13 {dimension_numbers = #tpu.dot_dimension_numbers<[1], [0], [0], [1], [0, 0, 1, 1], [], []>} : vector<8x64xbf16>, vector<64x64xbf16>, vector<8x64xf32> -> vector<8x64xf32>
    %21 = arith.addf %17, %20 : vector<8x64xf32>
    %22 = vector.extract_strided_slice %8 {offsets = [24, 0], sizes = [8, 64], strides = [1, 1]} : vector<72x64xbf16> to vector<8x64xbf16>
    %c192 = arith.constant 192 : index
    %c0_14 = arith.constant 0 : index
    %23 = vector.load %arg4[%c192, %c0_14] : memref<576x64xbf16, #tpu.memory_space<vmem>>, vector<64x64xbf16>
    %cst_15 = arith.constant dense<0.000000e+00> : vector<8x64xf32>
    %24 = tpu.matmul %22, %23, %cst_15 {dimension_numbers = #tpu.dot_dimension_numbers<[1], [0], [0], [1], [0, 0, 1, 1], [], []>} : vector<8x64xbf16>, vector<64x64xbf16>, vector<8x64xf32> -> vector<8x64xf32>
    %25 = arith.addf %21, %24 : vector<8x64xf32>
    %26 = vector.extract_strided_slice %8 {offsets = [32, 0], sizes = [8, 64], strides = [1, 1]} : vector<72x64xbf16> to vector<8x64xbf16>
    %c256 = arith.constant 256 : index
    %c0_16 = arith.constant 0 : index
    %27 = vector.load %arg4[%c256, %c0_16] : memref<576x64xbf16, #tpu.memory_space<vmem>>, vector<64x64xbf16>
    %cst_17 = arith.constant dense<0.000000e+00> : vector<8x64xf32>
    %28 = tpu.matmul %26, %27, %cst_17 {dimension_numbers = #tpu.dot_dimension_numbers<[1], [0], [0], [1], [0, 0, 1, 1], [], []>} : vector<8x64xbf16>, vector<64x64xbf16>, vector<8x64xf32> -> vector<8x64xf32>
    %29 = arith.addf %25, %28 : vector<8x64xf32>
    %30 = vector.extract_strided_slice %8 {offsets = [40, 0], sizes = [8, 64], strides = [1, 1]} : vector<72x64xbf16> to vector<8x64xbf16>
    %c320 = arith.constant 320 : index
    %c0_18 = arith.constant 0 : index
    %31 = vector.load %arg4[%c320, %c0_18] : memref<576x64xbf16, #tpu.memory_space<vmem>>, vector<64x64xbf16>
    %cst_19 = arith.constant dense<0.000000e+00> : vector<8x64xf32>
    %32 = tpu.matmul %30, %31, %cst_19 {dimension_numbers = #tpu.dot_dimension_numbers<[1], [0], [0], [1], [0, 0, 1, 1], [], []>} : vector<8x64xbf16>, vector<64x64xbf16>, vector<8x64xf32> -> vector<8x64xf32>
    %33 = arith.addf %29, %32 : vector<8x64xf32>
    %34 = vector.extract_strided_slice %8 {offsets = [48, 0], sizes = [8, 64], strides = [1, 1]} : vector<72x64xbf16> to vector<8x64xbf16>
    %c384 = arith.constant 384 : index
    %c0_20 = arith.constant 0 : index
    %35 = vector.load %arg4[%c384, %c0_20] : memref<576x64xbf16, #tpu.memory_space<vmem>>, vector<64x64xbf16>
    %cst_21 = arith.constant dense<0.000000e+00> : vector<8x64xf32>
    %36 = tpu.matmul %34, %35, %cst_21 {dimension_numbers = #tpu.dot_dimension_numbers<[1], [0], [0], [1], [0, 0, 1, 1], [], []>} : vector<8x64xbf16>, vector<64x64xbf16>, vector<8x64xf32> -> vector<8x64xf32>
    %37 = arith.addf %33, %36 : vector<8x64xf32>
    %38 = vector.extract_strided_slice %8 {offsets = [56, 0], sizes = [8, 64], strides = [1, 1]} : vector<72x64xbf16> to vector<8x64xbf16>
    %c448 = arith.constant 448 : index
    %c0_22 = arith.constant 0 : index
    %39 = vector.load %arg4[%c448, %c0_22] : memref<576x64xbf16, #tpu.memory_space<vmem>>, vector<64x64xbf16>
    %cst_23 = arith.constant dense<0.000000e+00> : vector<8x64xf32>
    %40 = tpu.matmul %38, %39, %cst_23 {dimension_numbers = #tpu.dot_dimension_numbers<[1], [0], [0], [1], [0, 0, 1, 1], [], []>} : vector<8x64xbf16>, vector<64x64xbf16>, vector<8x64xf32> -> vector<8x64xf32>
    %41 = arith.addf %37, %40 : vector<8x64xf32>
    %42 = vector.extract_strided_slice %8 {offsets = [64, 0], sizes = [8, 64], strides = [1, 1]} : vector<72x64xbf16> to vector<8x64xbf16>
    %c512 = arith.constant 512 : index
    %c0_24 = arith.constant 0 : index
    %43 = vector.load %arg4[%c512, %c0_24] : memref<576x64xbf16, #tpu.memory_space<vmem>>, vector<64x64xbf16>
    %cst_25 = arith.constant dense<0.000000e+00> : vector<8x64xf32>
    %44 = tpu.matmul %42, %43, %cst_25 {dimension_numbers = #tpu.dot_dimension_numbers<[1], [0], [0], [1], [0, 0, 1, 1], [], []>} : vector<8x64xbf16>, vector<64x64xbf16>, vector<8x64xf32> -> vector<8x64xf32>
    %45 = arith.addf %41, %44 : vector<8x64xf32>
    %c0_26 = arith.constant 0 : index
    %c0_27 = arith.constant 0 : index
    %46 = vector.load %arg5[%c0_26, %c0_27] : memref<1x64xf32, #tpu.memory_space<vmem>>, vector<1x64xf32>
    %47 = vector.broadcast %46 : vector<1x64xf32> to vector<8x64xf32>
    %48 = arith.addf %45, %47 : vector<8x64xf32>
    %cst_28 = arith.constant 0.000000e+00 : f32
    %49 = vector.broadcast %cst_28 : f32 to vector<8x64xf32>
    %50 = arith.maximumf %48, %49 : vector<8x64xf32>
    %51 = arith.truncf %50 : vector<8x64xf32> to vector<8x64xbf16>
    %c0_29 = arith.constant 0 : index
    %c0_30 = arith.constant 0 : index
    %52 = vector.load %arg6[%c0_29, %c0_30] : memref<128x1024xbf16, #tpu.memory_space<vmem>>, vector<64x1024xbf16>
    %cst_31 = arith.constant dense<0.000000e+00> : vector<8x1024xf32>
    %53 = tpu.matmul %51, %52, %cst_31 {dimension_numbers = #tpu.dot_dimension_numbers<[1], [0], [0], [1], [0, 0, 1, 1], [], []>} : vector<8x64xbf16>, vector<64x1024xbf16>, vector<8x1024xf32> -> vector<8x1024xf32>
    %c0_32 = arith.constant 0 : index
    %c0_33 = arith.constant 0 : index
    %54 = vector.load %arg1[%c0_32, %c0_33] : memref<8x64xbf16, #tpu.memory_space<vmem>>, vector<8x64xbf16>
    %c64_34 = arith.constant 64 : index
    %c0_35 = arith.constant 0 : index
    %55 = vector.load %arg6[%c64_34, %c0_35] : memref<128x1024xbf16, #tpu.memory_space<vmem>>, vector<64x1024xbf16>
    %cst_36 = arith.constant dense<0.000000e+00> : vector<8x1024xf32>
    %56 = tpu.matmul %54, %55, %cst_36 {dimension_numbers = #tpu.dot_dimension_numbers<[1], [0], [0], [1], [0, 0, 1, 1], [], []>} : vector<8x64xbf16>, vector<64x1024xbf16>, vector<8x1024xf32> -> vector<8x1024xf32>
    %57 = arith.addf %53, %56 : vector<8x1024xf32>
    %c0_37 = arith.constant 0 : index
    %c0_38 = arith.constant 0 : index
    %58 = vector.load %arg7[%c0_37, %c0_38] : memref<1x1024xf32, #tpu.memory_space<vmem>>, vector<1x1024xf32>
    %59 = vector.broadcast %58 : vector<1x1024xf32> to vector<8x1024xf32>
    %60 = arith.addf %57, %59 : vector<8x1024xf32>
    %cst_39 = arith.constant 0.000000e+00 : f32
    %61 = vector.broadcast %cst_39 : f32 to vector<8x1024xf32>
    %62 = arith.maximumf %60, %61 : vector<8x1024xf32>
    %63 = arith.truncf %62 : vector<8x1024xf32> to vector<8x1024xbf16>
    %c0_40 = arith.constant 0 : index
    %c0_41 = arith.constant 0 : index
    %64 = vector.load %arg8[%c0_40, %c0_41] : memref<1024x128xbf16, #tpu.memory_space<vmem>>, vector<1024x128xbf16>
    %cst_42 = arith.constant dense<0.000000e+00> : vector<8x128xf32>
    %65 = tpu.matmul %63, %64, %cst_42 {dimension_numbers = #tpu.dot_dimension_numbers<[1], [0], [0], [1], [0, 0, 1, 1], [], []>} : vector<8x1024xbf16>, vector<1024x128xbf16>, vector<8x128xf32> -> vector<8x128xf32>
    %c0_43 = arith.constant 0 : index
    %c0_44 = arith.constant 0 : index
    %66 = vector.load %arg9[%c0_43, %c0_44] : memref<1x128xf32, #tpu.memory_space<vmem>>, vector<1x128xf32>
    %67 = vector.broadcast %66 : vector<1x128xf32> to vector<8x128xf32>
    %68 = arith.addf %65, %67 : vector<8x128xf32>
    %69 = tpu.iota {dimensions = array<i32: 1>} : vector<8x128xi32>
    %c4_i32 = arith.constant 4 : i32
    %70 = vector.broadcast %c4_i32 : i32 to vector<8x128xi32>
    %71 = arith.cmpi slt, %69, %70 : vector<8x128xi32>
    %cst_45 = arith.constant 0.000000e+00 : f32
    %72 = vector.broadcast %cst_45 : f32 to vector<8x128xf32>
    %73 = arith.select %71, %68, %72 : vector<8x128xi1>, vector<8x128xf32>
    %cst_46 = arith.constant dense<0.000000e+00> : vector<8xf32>
    %74 = vector.multi_reduction <add>, %73, %cst_46 [1] : vector<8x128xf32> to vector<8xf32>
    %75 = vector.shape_cast %74 : vector<8xf32> to vector<8x1xf32>
    %c4_i32_47 = arith.constant 4 : i32
    %76 = vector.broadcast %c4_i32_47 : i32 to vector<8x128xi32>
    %77 = arith.cmpi eq, %69, %76 : vector<8x128xi32>
    %cst_48 = arith.constant 0.000000e+00 : f32
    %78 = vector.broadcast %cst_48 : f32 to vector<8x128xf32>
    %79 = arith.select %77, %68, %78 : vector<8x128xi1>, vector<8x128xf32>
    %cst_49 = arith.constant dense<0.000000e+00> : vector<8xf32>
    %80 = vector.multi_reduction <add>, %79, %cst_49 [1] : vector<8x128xf32> to vector<8xf32>
    %81 = vector.shape_cast %80 : vector<8xf32> to vector<8x1xf32>
    %82 = vector.broadcast %81 : vector<8x1xf32> to vector<8x128xf32>
    %83 = arith.addf %68, %82 : vector<8x128xf32>
    %cst_50 = arith.constant 2.500000e-01 : f32
    %84 = vector.broadcast %cst_50 : f32 to vector<8x1xf32>
    %85 = arith.mulf %75, %84 : vector<8x1xf32>
    %86 = vector.broadcast %85 : vector<8x1xf32> to vector<8x128xf32>
    %87 = arith.subf %83, %86 : vector<8x128xf32>
    %c0_51 = arith.constant 0 : index
    %c0_52 = arith.constant 0 : index
    %88 = vector.load %arg10[%c0_51, %c0_52] : memref<8x128xf32, #tpu.memory_space<vmem>>, vector<8x128xf32>
    tpu.vector_store %arg10[%c0_51, %c0_52], %87 {strides = array<i32>} : memref<8x128xf32, #tpu.memory_space<vmem>>, vector<8x128xf32>,
    return
  }
}

</mosaic_0001>

<llo_original>
// kernel: dueling_dqn_forward.2
$region0: #{dueling_dqn_forward.2}
  #allocation0 [shape = 'u32[]', space=smem, size = 0x4, offset = 0x4, fixed_abs, tag = 'smem constant byte address 0x4 - core index']
  #allocation1 [shape = 'u32[144,128]{1,0:T(1,128)}', space=vmem, size = 0x12000, scoped, tag = 'internal scratch']
  %s0 = inlined_call_operand.vmem [shape: bf16[128,192], index: 0, kind: input, shape index: {}]
  %s1 = inlined_call_operand.vmem [shape: bf16[192,128], index: 1, kind: input, shape index: {}]
  %s2 = inlined_call_operand.vmem [shape: f32[1,128], index: 2, kind: input, shape index: {}]
  %s3 = inlined_call_operand.vmem [shape: bf16[128,128], index: 3, kind: output, shape index: {}]
  %s4 = sld [smem:[#allocation0]]
  $region22: #{dueling_dqn_forward.2} parent=0
    _
  %s6 = ssub.s32 1, %s4
  %s7 = scalar_select 0, %s6, %s4
  // Predicated region
  $region2: #{dueling_dqn_forward.2} parent=0 // pred_check
    _
  $region3: #{dueling_dqn_forward.2} parent=0 // pred_check_branch
    %9 = sbr.rel (0) target = $region5
  $region4: #{dueling_dqn_forward.2} parent=0 // pred_region
    _
  $region5: #{dueling_dqn_forward.2} parent=0 // pred_fallthru
    _
  // Predicated region
  $region6: #{dueling_dqn_forward.2} parent=0 // pred_check
    _
  $region7: #{dueling_dqn_forward.2} parent=0 // pred_check_branch
    %11 = sbr.rel (0) target = $region9
  $region8: #{dueling_dqn_forward.2} parent=0 // pred_region
    _
  $region9: #{dueling_dqn_forward.2} parent=0 // pred_fallthru
    _
  // Predicated region
  $region10: #{dueling_dqn_forward.2} parent=0 // pred_check
    _
  $region11: #{dueling_dqn_forward.2} parent=0 // pred_check_branch
    %13 = sbr.rel (0) target = $region13
  $region12: #{dueling_dqn_forward.2} parent=0 // pred_region
    _
  $region13: #{dueling_dqn_forward.2} parent=0 // pred_fallthru
    _
  %v15 = vld [vmem:[%s0] sm:$0xff]
  %v16 = vld [vmem:[%s0 + $0x8] sm:$0xff]
  %v17 = vld [vmem:[%s0 + $0x10] sm:$0xff]
  %v18 = vld [vmem:[%s0 + $0x18] sm:$0xff]
  %v19 = vld [vmem:[%s0 + $0x20] sm:$0xff]
  %v20 = vld [vmem:[%s0 + $0x28] sm:$0xff]
  %v21 = vld [vmem:[%s0 + $0x30] sm:$0xff]
  %v22 = vld [vmem:[%s0 + $0x38] sm:$0xff]
  %v23 = vld [vmem:[%s0 + $0x40] sm:$0xff]
  %v24 = vld [vmem:[%s0 + $0x48] sm:$0xff]
  %v25 = vld [vmem:[%s0 + $0x50] sm:$0xff]
  %v26 = vld [vmem:[%s0 + $0x58] sm:$0xff]
  %v27 = vld [vmem:[%s0 + $0x60] sm:$0xff]
  %v28 = vld [vmem:[%s0 + $0x68] sm:$0xff]
  %v29 = vld [vmem:[%s0 + $0x70] sm:$0xff]
  %v30 = vld [vmem:[%s0 + $0x78] sm:$0xff]
  %v31 = vld [vmem:[%s1] sm:$0xf]
  %v32 = vld [vmem:[%s1 + $0x4] sm:$0xf]
  %v33 = vld [vmem:[%s1 + $0x8] sm:$0xf]
  %v34 = vld [vmem:[%s1 + $0xc] sm:$0xf]
  %v35 = vld [vmem:[%s1 + $0x10] sm:$0xf]
  %v36 = vld [vmem:[%s1 + $0x14] sm:$0xf]
  %v37 = vld [vmem:[%s1 + $0x18] sm:$0xf]
  %v38 = vld [vmem:[%s1 + $0x1c] sm:$0xf]
  %v39 = vld [vmem:[%s1 + $0x20] sm:$0xf]
  %v40 = vld [vmem:[%s1 + $0x24] sm:$0xf]
  %v41 = vld [vmem:[%s1 + $0x28] sm:$0xf]
  %v42 = vld [vmem:[%s1 + $0x2c] sm:$0xf]
  %v43 = vld [vmem:[%s1 + $0x30] sm:$0xf]
  %v44 = vld [vmem:[%s1 + $0x34] sm:$0xf]
  %v45 = vld [vmem:[%s1 + $0x38] sm:$0xf]
  %v46 = vld [vmem:[%s1 + $0x3c] sm:$0xf]
  %v47 = vld [vmem:[%s1 + $0x40] sm:$0xf]
  %v48 = vld [vmem:[%s1 + $0x44] sm:$0xf]
  %v49 = vld [vmem:[%s1 + $0x48] sm:$0xf]
  %v50 = vld [vmem:[%s1 + $0x4c] sm:$0xf]
  %v51 = vld [vmem:[%s1 + $0x50] sm:$0xf]
  %v52 = vld [vmem:[%s1 + $0x54] sm:$0xf]
  %v53 = vld [vmem:[%s1 + $0x58] sm:$0xf]
  %v54 = vld [vmem:[%s1 + $0x5c] sm:$0xf]
  %v55 = vld [vmem:[%s2] sm:$0x1]
  %v57 = vlaneseq
  %v58 = vshrl.u32 %v57, 7
  %v59 = vsub.s32 0, %v58
  %v60 = vrot.slane %v55, %v59
  %v78 = vunpack.c.l.b16 %v15
  %v79 = vunpack.c.h.b16 %v15
  %v80 = vunpack.c.l.b16 %v16
  %v81 = vunpack.c.h.b16 %v16
  %v82 = vunpack.c.l.b16 %v17
  %v83 = vunpack.c.h.b16 %v17
  %v84 = vunpack.c.l.b16 %v18
  %v85 = vunpack.c.h.b16 %v18
  %v86 = vunpack.c.l.b16 %v19
  %v87 = vunpack.c.h.b16 %v19
  %v88 = vunpack.c.l.b16 %v20
  %v89 = vunpack.c.h.b16 %v20
  %v90 = vunpack.c.l.b16 %v21
  %v91 = vunpack.c.h.b16 %v21
  %v92 = vunpack.c.l.b16 %v22
  %v93 = vunpack.c.h.b16 %v22
  %v94 = vunpack.c.l.b16 %v23
  %v95 = vunpack.c.h.b16 %v23
  %v96 = vunpack.c.l.b16 %v24
  %v97 = vunpack.c.h.b16 %v24
  %v98 = vunpack.c.l.b16 %v25
  %v99 = vunpack.c.h.b16 %v25
  %v100 = vunpack.c.l.b16 %v26
  %v101 = vunpack.c.h.b16 %v26
  %v102 = vunpack.c.l.b16 %v27
  %v103 = vunpack.c.h.b16 %v27
  %v104 = vunpack.c.l.b16 %v28
  %v105 = vunpack.c.h.b16 %v28
  %v106 = vunpack.c.l.b16 %v29
  %v107 = vunpack.c.h.b16 %v29
  %v108 = vunpack.c.l.b16 %v30
  %v109 = vunpack.c.h.b16 %v30
  %v110 = vpack.c.b16 %v80, %v78
  %v111 = vpack.c.b16 %v81, %v79
  %v112 = vpack.c.b16 %v84, %v82
  %v113 = vpack.c.b16 %v85, %v83
  %v114 = vpack.c.b16 %v88, %v86
  %v115 = vpack.c.b16 %v89, %v87
  %v116 = vpack.c.b16 %v92, %v90
  %v117 = vpack.c.b16 %v93, %v91
  %v118 = vpack.c.b16 %v96, %v94
  %v119 = vpack.c.b16 %v97, %v95
  %v120 = vpack.c.b16 %v100, %v98
  %v121 = vpack.c.b16 %v101, %v99
  %v122 = vpack.c.b16 %v104, %v102
  %v123 = vpack.c.b16 %v105, %v103
  %v124 = vpack.c.b16 %v108, %v106
  %v125 = vpack.c.b16 %v109, %v107
  %v158 = vunpack.c.l.b16 %v31
  %v159 = vunpack.c.l.b16 %v32
  %v160 = vunpack.c.l.b16 %v33
  %v161 = vunpack.c.l.b16 %v34
  %v162 = vunpack.c.l.b16 %v35
  %v163 = vunpack.c.l.b16 %v36
  %v164 = vunpack.c.l.b16 %v37
  %v165 = vunpack.c.l.b16 %v38
  %v166 = vunpack.c.l.b16 %v39
  %v167 = vunpack.c.l.b16 %v40
  %v168 = vunpack.c.l.b16 %v41
  %v169 = vunpack.c.l.b16 %v42
  %v170 = vunpack.c.l.b16 %v43
  %v171 = vunpack.c.l.b16 %v44
  %v172 = vunpack.c.l.b16 %v45
  %v173 = vunpack.c.l.b16 %v46
  %v174 = vunpack.c.l.b16 %v47
  %v175 = vunpack.c.l.b16 %v48
  %v176 = vunpack.c.l.b16 %v49
  %v177 = vunpack.c.l.b16 %v50
  %v178 = vunpack.c.l.b16 %v51
  %v179 = vunpack.c.l.b16 %v52
  %v180 = vunpack.c.l.b16 %v53
  %v181 = vunpack.c.l.b16 %v54
  %v182 = vpack.c.b16 %v159, %v158
  %v183 = vpack.c.b16 %v161, %v160
  %v184 = vpack.c.b16 %v163, %v162
  %v185 = vpack.c.b16 %v165, %v164
  %v186 = vpack.c.b16 %v167, %v166
  %v187 = vpack.c.b16 %v169, %v168
  %v188 = vpack.c.b16 %v171, %v170
  %v189 = vpack.c.b16 %v173, %v172
  %v190 = vpack.c.b16 %v175, %v174
  %v191 = vpack.c.b16 %v177, %v176
  %v192 = vpack.c.b16 %v179, %v178
  %v193 = vpack.c.b16 %v181, %v180
  %vm206 = vcmask 523264
  %v208 = vsel %vm206, %v111, 0
  %v211 = vsel %vm206, %v113, 0
  %v214 = vsel %vm206, %v115, 0
  %v217 = vsel %vm206, %v117, 0
  %v220 = vsel %vm206, %v119, 0
  %v223 = vsel %vm206, %v121, 0
  %v226 = vsel %vm206, %v123, 0
  %v229 = vsel %vm206, %v125, 0
  %231 = vmatprep.subr.bf16.mxu0 0
  %232 = vmatpush1.bf16.msra.mxu0 %v182
  %233 = vmatprep.subr.bf16.mxu0 0
  %234 = vmatpush1.bf16.msra.mxu0 %v183
  %235 = vmatprep.subr.bf16.mxu0 0
  %236 = vmatpush1.bf16.msra.mxu0 %v184
  %237 = vmatprep.subr.bf16.mxu0 0
  %238 = vmatpush1.bf16.msra.mxu0 %v185
  %239 = vmatprep.subr.bf16.mxu0 0
  %240 = vmatpush1.bf16.msra.mxu0 %v186
  %241 = vmatprep.subr.bf16.mxu0 0
  %242 = vmatpush1.bf16.msra.mxu0 %v187
  %243 = vmatprep.subr.bf16.mxu0 0
  %244 = vmatpush1.bf16.msra.mxu0 %v188
  %245 = vmatprep.subr.bf16.mxu0 0
  %246 = vmatpush1.bf16.msra.mxu0 %v189
  %247 = vmatprep.subr.bf16.mxu0 0
  %248 = vmatpush1.bf16.msra.mxu0 %v190
  %249 = vmatprep.subr.bf16.mxu0 0
  %250 = vmatpush1.bf16.msra.mxu0 %v191
  %251 = vmatprep.subr.bf16.mxu0 0
  %252 = vmatpush1.bf16.msra.mxu0 %v192
  %253 = vmatprep.subr.bf16.mxu0 0
  %254 = vmatpush1.bf16.msra.mxu0 %v193
  %255 = vmatprep.subr.bf16.mxu0 0
  %256 = vmatpush1.bf16.msra.mxu0 0
  %257 = vmatprep.subr.bf16.mxu0 0
  %258 = vmatpush1.bf16.msra.mxu0 0
  %259 = vmatprep.subr.bf16.mxu0 0
  %260 = vmatpush1.bf16.msra.mxu0 0
  %261 = vmatprep.subr.bf16.mxu0 0
  %262 = vmatpush1.bf16.msra.mxu0 0
  %263 = vmatprep.mubr.bf16.mxu0 %v208
  %264 = vmatmul.mubr.bf16.gmra.mrb[0].mxu0 %v110
  %v265 = vpop.f32.mrb[0].mxu0
  %v266 = vadd.f32 %v60, %v265
  %v267 = vpop.f32.mrb[0].mxu0
  %v268 = vpop.f32.mrb[0].mxu0
  %v269 = vadd.f32 %v60, %v268
  %v270 = vpop.f32.mrb[0].mxu0
  %271 = vmatprep.mubr.bf16.mxu0 %v211
  %272 = vmatmul.mubr.bf16.gmra.mrb[0].mxu0 %v112
  %v273 = vpop.f32.mrb[0].mxu0
  %v274 = vadd.f32 %v60, %v273
  %v275 = vpop.f32.mrb[0].mxu0
  %v276 = vpop.f32.mrb[0].mxu0
  %v277 = vadd.f32 %v60, %v276
  %v278 = vpop.f32.mrb[0].mxu0
  %279 = vmatprep.mubr.bf16.mxu0 %v214
  %280 = vmatmul.mubr.bf16.gmra.mrb[0].mxu0 %v114
  %v281 = vpop.f32.mrb[0].mxu0
  %v282 = vadd.f32 %v60, %v281
  %v283 = vpop.f32.mrb[0].mxu0
  %v284 = vpop.f32.mrb[0].mxu0
  %v285 = vadd.f32 %v60, %v284
  %v286 = vpop.f32.mrb[0].mxu0
  %287 = vmatprep.mubr.bf16.mxu0 %v217
  %288 = vmatmul.mubr.bf16.gmra.mrb[0].mxu0 %v116
  %v289 = vpop.f32.mrb[0].mxu0
  %v290 = vadd.f32 %v60, %v289
  %v291 = vpop.f32.mrb[0].mxu0
  %v292 = vpop.f32.mrb[0].mxu0
  %v293 = vadd.f32 %v60, %v292
  %v294 = vpop.f32.mrb[0].mxu0
  %295 = vmatprep.mubr.bf16.mxu0 %v220
  %296 = vmatmul.mubr.bf16.gmra.mrb[0].mxu0 %v118
  %v297 = vpop.f32.mrb[0].mxu0
  %v298 = vadd.f32 %v60, %v297
  %v299 = vpop.f32.mrb[0].mxu0
  %v300 = vpop.f32.mrb[0].mxu0
  %v301 = vadd.f32 %v60, %v300
  %v302 = vpop.f32.mrb[0].mxu0
  %303 = vmatprep.mubr.bf16.mxu0 %v223
  %304 = vmatmul.mubr.bf16.gmra.mrb[0].mxu0 %v120
  %v305 = vpop.f32.mrb[0].mxu0
  %v306 = vadd.f32 %v60, %v305
  %v307 = vpop.f32.mrb[0].mxu0
  %v308 = vpop.f32.mrb[0].mxu0
  %v309 = vadd.f32 %v60, %v308
  %v310 = vpop.f32.mrb[0].mxu0
  %311 = vmatprep.mubr.bf16.mxu0 %v226
  %312 = vmatmul.mubr.bf16.gmra.mrb[0].mxu0 %v122
  %v313 = vpop.f32.mrb[0].mxu0
  %v314 = vadd.f32 %v60, %v313
  %v315 = vpop.f32.mrb[0].mxu0
  %v316 = vpop.f32.mrb[0].mxu0
  %v317 = vadd.f32 %v60, %v316
  %v318 = vpop.f32.mrb[0].mxu0
  %319 = vmatprep.mubr.bf16.mxu0 %v229
  %320 = vmatmul.mubr.bf16.gmra.mrb[0].mxu0 %v124
  %v321 = vpop.f32.mrb[0].mxu0
  %v322 = vadd.f32 %v60, %v321
  %v323 = vpop.f32.mrb[0].mxu0
  %v324 = vpop.f32.mrb[0].mxu0
  %v325 = vadd.f32 %v60, %v324
  %v326 = vpop.f32.mrb[0].mxu0
  %327 = vdwg.mxu0
  %v328 = vmax.f32 %v266, 0.0
  %v329 = vmax.f32 %v269, 0.0
  %v330 = vmax.f32 %v274, 0.0
  %v331 = vmax.f32 %v277, 0.0
  %v332 = vmax.f32 %v282, 0.0
  %v333 = vmax.f32 %v285, 0.0
  %v334 = vmax.f32 %v290, 0.0
  %v335 = vmax.f32 %v293, 0.0
  %v336 = vmax.f32 %v298, 0.0
  %v337 = vmax.f32 %v301, 0.0
  %v338 = vmax.f32 %v306, 0.0
  %v339 = vmax.f32 %v309, 0.0
  %v340 = vmax.f32 %v314, 0.0
  %v341 = vmax.f32 %v317, 0.0
  %v342 = vmax.f32 %v322, 0.0
  %v343 = vmax.f32 %v325, 0.0
  %v344 = vpack.c.bf16 %v329, %v328
  %v345 = vpack.c.bf16 %v331, %v330
  %v346 = vpack.c.bf16 %v333, %v332
  %v347 = vpack.c.bf16 %v335, %v334
  %v348 = vpack.c.bf16 %v337, %v336
  %v349 = vpack.c.bf16 %v339, %v338
  %v350 = vpack.c.bf16 %v341, %v340
  %v351 = vpack.c.bf16 %v343, %v342
  %v360 = vunpack.c.l.b16 %v344
  %v361 = vunpack.c.h.b16 %v344
  %v362 = vunpack.c.l.b16 %v345
  %v363 = vunpack.c.h.b16 %v345
  %v364 = vunpack.c.l.b16 %v346
  %v365 = vunpack.c.h.b16 %v346
  %v366 = vunpack.c.l.b16 %v347
  %v367 = vunpack.c.h.b16 %v347
  %v368 = vunpack.c.l.b16 %v348
  %v369 = vunpack.c.h.b16 %v348
  %v370 = vunpack.c.l.b16 %v349
  %v371 = vunpack.c.h.b16 %v349
  %v372 = vunpack.c.l.b16 %v350
  %v373 = vunpack.c.h.b16 %v350
  %v374 = vunpack.c.l.b16 %v351
  %v375 = vunpack.c.h.b16 %v351
  %v376 = vpack.c.b16 %v360, %v360
  %v377 = vpack.c.b16 %v361, %v361
  %v378 = vpack.c.b16 %v362, %v362
  %v379 = vpack.c.b16 %v363, %v363
  %v380 = vpack.c.b16 %v364, %v364
  %v381 = vpack.c.b16 %v365, %v365
  %v382 = vpack.c.b16 %v366, %v366
  %v383 = vpack.c.b16 %v367, %v367
  %v384 = vpack.c.b16 %v368, %v368
  %v385 = vpack.c.b16 %v369, %v369
  %v386 = vpack.c.b16 %v370, %v370
  %v387 = vpack.c.b16 %v371, %v371
  %v388 = vpack.c.b16 %v372, %v372
  %v389 = vpack.c.b16 %v373, %v373
  %v390 = vpack.c.b16 %v374, %v374
  %v391 = vpack.c.b16 %v375, %v375
  %408 = vst [vmem:[%s3] sm:$0xf] %v376
  %409 = vst [vmem:[%s3 + $0x4] sm:$0xf] %v377
  %410 = vst [vmem:[%s3 + $0x8] sm:$0xf] %v378
  %411 = vst [vmem:[%s3 + $0xc] sm:$0xf] %v379
  %412 = vst [vmem:[%s3 + $0x10] sm:$0xf] %v380
  %413 = vst [vmem:[%s3 + $0x14] sm:$0xf] %v381
  %414 = vst [vmem:[%s3 + $0x18] sm:$0xf] %v382
  %415 = vst [vmem:[%s3 + $0x1c] sm:$0xf] %v383
  %416 = vst [vmem:[%s3 + $0x20] sm:$0xf] %v384
  %417 = vst [vmem:[%s3 + $0x24] sm:$0xf] %v385
  %418 = vst [vmem:[%s3 + $0x28] sm:$0xf] %v386
  %419 = vst [vmem:[%s3 + $0x2c] sm:$0xf] %v387
  %420 = vst [vmem:[%s3 + $0x30] sm:$0xf] %v388
  %421 = vst [vmem:[%s3 + $0x34] sm:$0xf] %v389
  %422 = vst [vmem:[%s3 + $0x38] sm:$0xf] %v390
  %423 = vst [vmem:[%s3 + $0x3c] sm:$0xf] %v391
  // Predicated region
  $region14: #{dueling_dqn_forward.2} parent=0 // pred_check
    _
  $region15: #{dueling_dqn_forward.2} parent=0 // pred_check_branch
    %425 = sbr.rel (0) target = $region17
  $region16: #{dueling_dqn_forward.2} parent=0 // pred_region
    _
  $region17: #{dueling_dqn_forward.2} parent=0 // pred_fallthru
    _
  // Predicated region
  $region18: #{dueling_dqn_forward.2} parent=0 // pred_check
    _
  $region19: #{dueling_dqn_forward.2} parent=0 // pred_check_branch
    %427 = sbr.rel (0) target = $region21
  $region20: #{dueling_dqn_forward.2} parent=0 // pred_region
    _
  $region21: #{dueling_dqn_forward.2} parent=0 // pred_fallthru
    _

// kernel: dueling_dqn_forward.3
$region0: #{dueling_dqn_forward.3}
  #allocation0 [shape = 'u32[]', space=smem, size = 0x4, offset = 0x4, fixed_abs, tag = 'smem constant byte address 0x4 - core index']
  #allocation1 [shape = 'u32[144,128]{1,0:T(1,128)}', space=vmem, size = 0x12000, scoped, tag = 'internal scratch']
  %s0 = inlined_call_operand.vmem [shape: bf16[72,512], index: 0, kind: input, shape index: {}]
  %s1 = inlined_call_operand.vmem [shape: bf16[8,64], index: 1, kind: input, shape index: {}]
  %s2 = inlined_call_operand.vmem [shape: bf16[512,64], index: 2, kind: input, shape index: {}]
  %s3 = inlined_call_operand.vmem [shape: f32[1,64], index: 3, kind: input, shape index: {}]
  %s4 = inlined_call_operand.vmem [shape: bf16[576,64], index: 4, kind: input, shape index: {}]
  %s5 = inlined_call_operand.vmem [shape: f32[1,64], index: 5, kind: input, shape index: {}]
  %s6 = inlined_call_operand.vmem [shape: bf16[128,1024], index: 6, kind: input, shape index: {}]
  %s7 = inlined_call_operand.vmem [shape: f32[1,1024], index: 7, kind: input, shape index: {}]
  %s8 = inlined_call_operand.vmem [shape: bf16[1024,128], index: 8, kind: input, shape index: {}]
  %s9 = inlined_call_operand.vmem [shape: f32[1,128], index: 9, kind: input, shape index: {}]
  %s10 = inlined_call_operand.vmem [shape: f32[8,128], index: 10, kind: output, shape index: {}]
  %s11 = sld [smem:[#allocation0]]
  $region50: #{dueling_dqn_forward.3} parent=0
    _
  %s13 = ssub.s32 1, %s11
  %s14 = scalar_select 0, %s13, %s11
  // Predicated region
  $region2: #{dueling_dqn_forward.3} parent=0 // pred_check
    _
  $region3: #{dueling_dqn_forward.3} parent=0 // pred_check_branch
    %16 = sbr.rel (0) target = $region5
  $region4: #{dueling_dqn_forward.3} parent=0 // pred_region
    _
  $region5: #{dueling_dqn_forward.3} parent=0 // pred_fallthru
    _
  // Predicated region
  $region6: #{dueling_dqn_forward.3} parent=0 // pred_check
    _
  $region7: #{dueling_dqn_forward.3} parent=0 // pred_check_branch
    %18 = sbr.rel (0) target = $region9
  $region8: #{dueling_dqn_forward.3} parent=0 // pred_region
    _
  $region9: #{dueling_dqn_forward.3} parent=0 // pred_fallthru
    _
  // Predicated region
  $region10: #{dueling_dqn_forward.3} parent=0 // pred_check
    _
  $region11: #{dueling_dqn_forward.3} parent=0 // pred_check_branch
    %20 = sbr.rel (0) target = $region13
  $region12: #{dueling_dqn_forward.3} parent=0 // pred_region
    _
  $region13: #{dueling_dqn_forward.3} parent=0 // pred_fallthru
    _
  // Predicated region
  $region14: #{dueling_dqn_forward.3} parent=0 // pred_check
    _
  $region15: #{dueling_dqn_forward.3} parent=0 // pred_check_branch
    %22 = sbr.rel (0) target = $region17
  $region16: #{dueling_dqn_forward.3} parent=0 // pred_region
    _
  $region17: #{dueling_dqn_forward.3} parent=0 // pred_fallthru
    _
  // Predicated region
  $region18: #{dueling_dqn_forward.3} parent=0 // pred_check
    _
  $region19: #{dueling_dqn_forward.3} parent=0 // pred_check_branch
    %24 = sbr.rel (0) target = $region21
  $region20: #{dueling_dqn_forward.3} parent=0 // pred_region
    _
  $region21: #{dueling_dqn_forward.3} parent=0 // pred_fallthru
    _
  // Predicated region
  $region22: #{dueling_dqn_forward.3} parent=0 // pred_check
    _
  $region23: #{dueling_dqn_forward.3} parent=0 // pred_check_branch
    %26 = sbr.rel (0) target = $region25
  $region24: #{dueling_dqn_forward.3} parent=0 // pred_region
    _
  $region25: #{dueling_dqn_forward.3} parent=0 // pred_fallthru
    _
  // Predicated region
  $region26: #{dueling_dqn_forward.3} parent=0 // pred_check
    _
  $region27: #{dueling_dqn_forward.3} parent=0 // pred_check_branch
    %28 = sbr.rel (0) target = $region29
  $region28: #{dueling_dqn_forward.3} parent=0 // pred_region
    _
  $region29: #{dueling_dqn_forward.3} parent=0 // pred_fallthru
    _
  // Predicated region
  $region30: #{dueling_dqn_forward.3} parent=0 // pred_check
    _
  $region31: #{dueling_dqn_forward.3} parent=0 // pred_check_branch
    %30 = sbr.rel (0) target = $region33
  $region32: #{dueling_dqn_forward.3} parent=0 // pred_region
    _
  $region33: #{dueling_dqn_forward.3} parent=0 // pred_fallthru
    _
  // Predicated region
  $region34: #{dueling_dqn_forward.3} parent=0 // pred_check
    _
  $region35: #{dueling_dqn_forward.3} parent=0 // pred_check_branch
    %32 = sbr.rel (0) target = $region37
  $region36: #{dueling_dqn_forward.3} parent=0 // pred_region
    _
  $region37: #{dueling_dqn_forward.3} parent=0 // pred_fallthru
    _
  // Predicated region
  $region38: #{dueling_dqn_forward.3} parent=0 // pred_check
    _
  $region39: #{dueling_dqn_forward.3} parent=0 // pred_check_branch
    %34 = sbr.rel (0) target = $region41
  $region40: #{dueling_dqn_forward.3} parent=0 // pred_region
    _
  $region41: #{dueling_dqn_forward.3} parent=0 // pred_fallthru
    _
  %v36 = vld [vmem:[%s0] sm:$0xff]
  %v37 = vld [vmem:[%s0 + $0x8] sm:$0xff]
  %v38 = vld [vmem:[%s0 + $0x10] sm:$0xff]
  %v39 = vld [vmem:[%s0 + $0x18] sm:$0xff]
  %v40 = vld [vmem:[%s0 + $0x20] sm:$0xff]
  %v41 = vld [vmem:[%s0 + $0x28] sm:$0xff]
  %v42 = vld [vmem:[%s0 + $0x30] sm:$0xff]
  %v43 = vld [vmem:[%s0 + $0x38] sm:$0xff]
  %v44 = vld [vmem:[%s0 + $0x40] sm:$0xff]
  %v45 = vld [vmem:[%s0 + $0x48] sm:$0xff]
  %v46 = vld [vmem:[%s0 + $0x50] sm:$0xff]
  %v47 = vld [vmem:[%s0 + $0x58] sm:$0xff]
  %v48 = vld [vmem:[%s0 + $0x60] sm:$0xff]
  %v49 = vld [vmem:[%s0 + $0x68] sm:$0xff]
  %v50 = vld [vmem:[%s0 + $0x70] sm:$0xff]
  %v51 = vld [vmem:[%s0 + $0x78] sm:$0xff]
  %v52 = vld [vmem:[%s0 + $0x80] sm:$0xff]
  %v53 = vld [vmem:[%s0 + $0x88] sm:$0xff]
  %v54 = vld [vmem:[%s2] sm:$0xf]
  %v55 = vld [vmem:[%s2 + $0x4] sm:$0xf]
  %v56 = vld [vmem:[%s2 + $0x8] sm:$0xf]
  %v57 = vld [vmem:[%s2 + $0xc] sm:$0xf]
  %v58 = vld [vmem:[%s2 + $0x10] sm:$0xf]
  %v59 = vld [vmem:[%s2 + $0x14] sm:$0xf]
  %v60 = vld [vmem:[%s2 + $0x18] sm:$0xf]
  %v61 = vld [vmem:[%s2 + $0x1c] sm:$0xf]
  %v62 = vld [vmem:[%s2 + $0x20] sm:$0xf]
  %v63 = vld [vmem:[%s2 + $0x24] sm:$0xf]
  %v64 = vld [vmem:[%s2 + $0x28] sm:$0xf]
  %v65 = vld [vmem:[%s2 + $0x2c] sm:$0xf]
  %v66 = vld [vmem:[%s2 + $0x30] sm:$0xf]
  %v67 = vld [vmem:[%s2 + $0x34] sm:$0xf]
  %v68 = vld [vmem:[%s2 + $0x38] sm:$0xf]
  %v69 = vld [vmem:[%s2 + $0x3c] sm:$0xf]
  %v70 = vld [vmem:[%s2 + $0x40] sm:$0xf]
  %v71 = vld [vmem:[%s2 + $0x44] sm:$0xf]
  %v72 = vld [vmem:[%s2 + $0x48] sm:$0xf]
  %v73 = vld [vmem:[%s2 + $0x4c] sm:$0xf]
  %v74 = vld [vmem:[%s2 + $0x50] sm:$0xf]
  %v75 = vld [vmem:[%s2 + $0x54] sm:$0xf]
  %v76 = vld [vmem:[%s2 + $0x58] sm:$0xf]
  %v77 = vld [vmem:[%s2 + $0x5c] sm:$0xf]
  %v78 = vld [vmem:[%s2 + $0x60] sm:$0xf]
  %v79 = vld [vmem:[%s2 + $0x64] sm:$0xf]
  %v80 = vld [vmem:[%s2 + $0x68] sm:$0xf]
  %v81 = vld [vmem:[%s2 + $0x6c] sm:$0xf]
  %v82 = vld [vmem:[%s2 + $0x70] sm:$0xf]
  %v83 = vld [vmem:[%s2 + $0x74] sm:$0xf]
  %v84 = vld [vmem:[%s2 + $0x78] sm:$0xf]
  %v85 = vld [vmem:[%s2 + $0x7c] sm:$0xf]
  %v86 = vld [vmem:[%s2 + $0x80] sm:$0xf]
  %v87 = vld [vmem:[%s2 + $0x84] sm:$0xf]
  %v88 = vld [vmem:[%s2 + $0x88] sm:$0xf]
  %v89 = vld [vmem:[%s2 + $0x8c] sm:$0xf]
  %v90 = vld [vmem:[%s2 + $0x90] sm:$0xf]
  %v91 = vld [vmem:[%s2 + $0x94] sm:$0xf]
  %v92 = vld [vmem:[%s2 + $0x98] sm:$0xf]
  %v93 = vld [vmem:[%s2 + $0x9c] sm:$0xf]
  %v94 = vld [vmem:[%s2 + $0xa0] sm:$0xf]
  %v95 = vld [vmem:[%s2 + $0xa4] sm:$0xf]
  %v96 = vld [vmem:[%s2 + $0xa8] sm:$0xf]
  %v97 = vld [vmem:[%s2 + $0xac] sm:$0xf]
  %v98 = vld [vmem:[%s2 + $0xb0] sm:$0xf]
  %v99 = vld [vmem:[%s2 + $0xb4] sm:$0xf]
  %v100 = vld [vmem:[%s2 + $0xb8] sm:$0xf]
  %v101 = vld [vmem:[%s2 + $0xbc] sm:$0xf]
  %v102 = vld [vmem:[%s2 + $0xc0] sm:$0xf]
  %v103 = vld [vmem:[%s2 + $0xc4] sm:$0xf]
  %v104 = vld [vmem:[%s2 + $0xc8] sm:$0xf]
  %v105 = vld [vmem:[%s2 + $0xcc] sm:$0xf]
  %v106 = vld [vmem:[%s2 + $0xd0] sm:$0xf]
  %v107 = vld [vmem:[%s2 + $0xd4] sm:$0xf]
  %v108 = vld [vmem:[%s2 + $0xd8] sm:$0xf]
  %v109 = vld [vmem:[%s2 + $0xdc] sm:$0xf]
  %v110 = vld [vmem:[%s2 + $0xe0] sm:$0xf]
  %v111 = vld [vmem:[%s2 + $0xe4] sm:$0xf]
  %v112 = vld [vmem:[%s2 + $0xe8] sm:$0xf]
  %v113 = vld [vmem:[%s2 + $0xec] sm:$0xf]
  %v114 = vld [vmem:[%s2 + $0xf0] sm:$0xf]
  %v115 = vld [vmem:[%s2 + $0xf4] sm:$0xf]
  %v116 = vld [vmem:[%s2 + $0xf8] sm:$0xf]
  %v117 = vld [vmem:[%s2 + $0xfc] sm:$0xf]
  %v118 = vld [vmem:[%s3] sm:$0x1]
  %v120 = vlaneseq
  %v121 = vshrl.u32 %v120, 7
  %v122 = vsub.s32 0, %v121
  %v123 = vrot.slane %v118, %v122
  %v143 = vunpack.c.l.b16 %v36
  %v144 = vunpack.c.h.b16 %v36
  %v145 = vunpack.c.l.b16 %v37
  %v146 = vunpack.c.h.b16 %v37
  %v147 = vunpack.c.l.b16 %v38
  %v148 = vunpack.c.h.b16 %v38
  %v149 = vunpack.c.l.b16 %v39
  %v150 = vunpack.c.h.b16 %v39
  %v151 = vunpack.c.l.b16 %v40
  %v152 = vunpack.c.h.b16 %v40
  %v153 = vunpack.c.l.b16 %v41
  %v154 = vunpack.c.h.b16 %v41
  %v155 = vunpack.c.l.b16 %v42
  %v156 = vunpack.c.h.b16 %v42
  %v157 = vunpack.c.l.b16 %v43
  %v158 = vunpack.c.h.b16 %v43
  %v159 = vunpack.c.l.b16 %v44
  %v160 = vunpack.c.h.b16 %v44
  %v161 = vunpack.c.l.b16 %v45
  %v162 = vunpack.c.h.b16 %v45
  %v163 = vunpack.c.l.b16 %v46
  %v164 = vunpack.c.h.b16 %v46
  %v165 = vunpack.c.l.b16 %v47
  %v166 = vunpack.c.h.b16 %v47
  %v167 = vunpack.c.l.b16 %v48
  %v168 = vunpack.c.h.b16 %v48
  %v169 = vunpack.c.l.b16 %v49
  %v170 = vunpack.c.h.b16 %v49
  %v171 = vunpack.c.l.b16 %v50
  %v172 = vunpack.c.h.b16 %v50
  %v173 = vunpack.c.l.b16 %v51
  %v174 = vunpack.c.h.b16 %v51
  %v175 = vunpack.c.l.b16 %v52
  %v176 = vunpack.c.h.b16 %v52
  %v177 = vunpack.c.l.b16 %v53
  %v178 = vunpack.c.h.b16 %v53
  %v179 = vpack.c.b16 %v147, %v143
  %v180 = vpack.c.b16 %v148, %v144
  %v181 = vpack.c.b16 %v149, %v145
  %v182 = vpack.c.b16 %v150, %v146
  %v183 = vpack.c.b16 %v155, %v151
  %v184 = vpack.c.b16 %v156, %v152
  %v185 = vpack.c.b16 %v157, %v153
  %v186 = vpack.c.b16 %v158, %v154
  %v187 = vpack.c.b16 %v163, %v159
  %v188 = vpack.c.b16 %v164, %v160
  %v189 = vpack.c.b16 %v165, %v161
  %v190 = vpack.c.b16 %v166, %v162
  %v191 = vpack.c.b16 %v171, %v167
  %v192 = vpack.c.b16 %v172, %v168
  %v193 = vpack.c.b16 %v173, %v169
  %v194 = vpack.c.b16 %v174, %v170
  %v195 = vpack.c.b16 %v175, %v175
  %v196 = vpack.c.b16 %v176, %v176
  %v197 = vpack.c.b16 %v177, %v177
  %v198 = vpack.c.b16 %v178, %v178
  %v283 = vunpack.c.l.b16 %v54
  %v284 = vunpack.c.l.b16 %v55
  %v285 = vunpack.c.l.b16 %v56
  %v286 = vunpack.c.l.b16 %v57
  %v287 = vunpack.c.l.b16 %v58
  %v288 = vunpack.c.l.b16 %v59
  %v289 = vunpack.c.l.b16 %v60
  %v290 = vunpack.c.l.b16 %v61
  %v291 = vunpack.c.l.b16 %v62
  %v292 = vunpack.c.l.b16 %v63
  %v293 = vunpack.c.l.b16 %v64
  %v294 = vunpack.c.l.b16 %v65
  %v295 = vunpack.c.l.b16 %v66
  %v296 = vunpack.c.l.b16 %v67
  %v297 = vunpack.c.l.b16 %v68
  %v298 = vunpack.c.l.b16 %v69
  %v299 = vunpack.c.l.b16 %v70
  %v300 = vunpack.c.l.b16 %v71
  %v301 = vunpack.c.l.b16 %v72
  %v302 = vunpack.c.l.b16 %v73
  %v303 = vunpack.c.l.b16 %v74
  %v304 = vunpack.c.l.b16 %v75
  %v305 = vunpack.c.l.b16 %v76
  %v306 = vunpack.c.l.b16 %v77
  %v307 = vunpack.c.l.b16 %v78
  %v308 = vunpack.c.l.b16 %v79
  %v309 = vunpack.c.l.b16 %v80
  %v310 = vunpack.c.l.b16 %v81
  %v311 = vunpack.c.l.b16 %v82
  %v312 = vunpack.c.l.b16 %v83
  %v313 = vunpack.c.l.b16 %v84
  %v314 = vunpack.c.l.b16 %v85
  %v315 = vunpack.c.l.b16 %v86
  %v316 = vunpack.c.l.b16 %v87
  %v317 = vunpack.c.l.b16 %v88
  %v318 = vunpack.c.l.b16 %v89
  %v319 = vunpack.c.l.b16 %v90
  %v320 = vunpack.c.l.b16 %v91
  %v321 = vunpack.c.l.b16 %v92
  %v322 = vunpack.c.l.b16 %v93
  %v323 = vunpack.c.l.b16 %v94
  %v324 = vunpack.c.l.b16 %v95
  %v325 = vunpack.c.l.b16 %v96
  %v326 = vunpack.c.l.b16 %v97
  %v327 = vunpack.c.l.b16 %v98
  %v328 = vunpack.c.l.b16 %v99
  %v329 = vunpack.c.l.b16 %v100
  %v330 = vunpack.c.l.b16 %v101
  %v331 = vunpack.c.l.b16 %v102
  %v332 = vunpack.c.l.b16 %v103
  %v333 = vunpack.c.l.b16 %v104
  %v334 = vunpack.c.l.b16 %v105
  %v335 = vunpack.c.l.b16 %v106
  %v336 = vunpack.c.l.b16 %v107
  %v337 = vunpack.c.l.b16 %v108
  %v338 = vunpack.c.l.b16 %v109
  %v339 = vunpack.c.l.b16 %v110
  %v340 = vunpack.c.l.b16 %v111
  %v341 = vunpack.c.l.b16 %v112
  %v342 = vunpack.c.l.b16 %v113
  %v343 = vunpack.c.l.b16 %v114
  %v344 = vunpack.c.l.b16 %v115
  %v345 = vunpack.c.l.b16 %v116
  %v346 = vunpack.c.l.b16 %v117
  %v347 = vpack.c.b16 %v284, %v283
  %v348 = vpack.c.b16 %v286, %v285
  %v349 = vpack.c.b16 %v288, %v287
  %v350 = vpack.c.b16 %v290, %v289
  %v351 = vpack.c.b16 %v292, %v291
  %v352 = vpack.c.b16 %v294, %v293
  %v353 = vpack.c.b16 %v296, %v295
  %v354 = vpack.c.b16 %v298, %v297
  %v355 = vpack.c.b16 %v300, %v299
  %v356 = vpack.c.b16 %v302, %v301
  %v357 = vpack.c.b16 %v304, %v303
  %v358 = vpack.c.b16 %v306, %v305
  %v359 = vpack.c.b16 %v308, %v307
  %v360 = vpack.c.b16 %v310, %v309
  %v361 = vpack.c.b16 %v312, %v311
  %v362 = vpack.c.b16 %v314, %v313
  %v363 = vpack.c.b16 %v316, %v315
  %v364 = vpack.c.b16 %v318, %v317
  %v365 = vpack.c.b16 %v320, %v319
  %v366 = vpack.c.b16 %v322, %v321
  %v367 = vpack.c.b16 %v324, %v323
  %v368 = vpack.c.b16 %v326, %v325
  %v369 = vpack.c.b16 %v328, %v327
  %v370 = vpack.c.b16 %v330, %v329
  %v371 = vpack.c.b16 %v332, %v331
  %v372 = vpack.c.b16 %v334, %v333
  %v373 = vpack.c.b16 %v336, %v335
  %v374 = vpack.c.b16 %v338, %v337
  %v375 = vpack.c.b16 %v340, %v339
  %v376 = vpack.c.b16 %v342, %v341
  %v377 = vpack.c.b16 %v344, %v343
  %v378 = vpack.c.b16 %v346, %v345
  %411 = vmatprep.subr.bf16.mxu0 0
  %412 = vmatpush1.bf16.msra.mxu0 %v347
  %413 = vmatprep.subr.bf16.mxu0 0
  %414 = vmatpush1.bf16.msra.mxu0 %v348
  %415 = vmatprep.subr.bf16.mxu0 0
  %416 = vmatpush1.bf16.msra.mxu0 %v349
  %417 = vmatprep.subr.bf16.mxu0 0
  %418 = vmatpush1.bf16.msra.mxu0 %v350
  %419 = vmatprep.subr.bf16.mxu0 0
  %420 = vmatpush1.bf16.msra.mxu0 %v351
  %421 = vmatprep.subr.bf16.mxu0 0
  %422 = vmatpush1.bf16.msra.mxu0 %v352
  %423 = vmatprep.subr.bf16.mxu0 0
  %424 = vmatpush1.bf16.msra.mxu0 %v353
  %425 = vmatprep.subr.bf16.mxu0 0
  %426 = vmatpush1.bf16.msra.mxu0 %v354
  %427 = vmatprep.subr.bf16.mxu0 0
  %428 = vmatpush1.bf16.msra.mxu0 %v355
  %429 = vmatprep.subr.bf16.mxu0 0
  %430 = vmatpush1.bf16.msra.mxu0 %v356
  %431 = vmatprep.subr.bf16.mxu0 0
  %432 = vmatpush1.bf16.msra.mxu0 %v357
  %433 = vmatprep.subr.bf16.mxu0 0
  %434 = vmatpush1.bf16.msra.mxu0 %v358
  %435 = vmatprep.subr.bf16.mxu0 0
  %436 = vmatpush1.bf16.msra.mxu0 %v359
  %437 = vmatprep.subr.bf16.mxu0 0
  %438 = vmatpush1.bf16.msra.mxu0 %v360
  %439 = vmatprep.subr.bf16.mxu0 0
  %440 = vmatpush1.bf16.msra.mxu0 %v361
  %441 = vmatprep.subr.bf16.mxu0 0
  %442 = vmatpush1.bf16.msra.mxu0 %v362
  %443 = vmatprep.mubr.bf16.mxu0 %v180
  %444 = vmatmul.mubr.bf16.gmra.mrb[0].mxu0 %v179
  %v445 = vpop.f32.mrb[0].mxu0
  %v446 = vadd.f32 %v123, %v445
  %v447 = vpop.f32.mrb[0].mxu0
  %v448 = vpop.f32.mrb[0].mxu0
  %v449 = vadd.f32 %v123, %v448
  %v450 = vpop.f32.mrb[0].mxu0
  %451 = vmatprep.mubr.bf16.mxu0 %v184
  %452 = vmatmul.mubr.bf16.gmra.mrb[0].mxu0 %v183
  %v453 = vpop.f32.mrb[0].mxu0
  %v454 = vadd.f32 %v123, %v453
  %v455 = vpop.f32.mrb[0].mxu0
  %v456 = vpop.f32.mrb[0].mxu0
  %v457 = vadd.f32 %v123, %v456
  %v458 = vpop.f32.mrb[0].mxu0
  %459 = vmatprep.mubr.bf16.mxu0 %v188
  %460 = vmatmul.mubr.bf16.gmra.mrb[0].mxu0 %v187
  %v461 = vpop.f32.mrb[0].mxu0
  %v462 = vadd.f32 %v123, %v461
  %v463 = vpop.f32.mrb[0].mxu0
  %v464 = vpop.f32.mrb[0].mxu0
  %v465 = vadd.f32 %v123, %v464
  %v466 = vpop.f32.mrb[0].mxu0
  %467 = vmatprep.mubr.bf16.mxu0 %v192
  %468 = vmatmul.mubr.bf16.gmra.mrb[0].mxu0 %v191
  %v469 = vpop.f32.mrb[0].mxu0
  %v470 = vadd.f32 %v123, %v469
  %v471 = vpop.f32.mrb[0].mxu0
  %v472 = vpop.f32.mrb[0].mxu0
  %v473 = vadd.f32 %v123, %v472
  %v474 = vpop.f32.mrb[0].mxu0
  %475 = vmatprep.mubr.bf16.mxu0 %v196
  %476 = vmatmul.mubr.bf16.gmra.mrb[0].mxu0 %v195
  %v477 = vpop.f32.mrb[0].mxu0
  %v478 = vadd.f32 %v123, %v477
  %v479 = vpop.f32.mrb[0].mxu0
  %v480 = vpop.f32.mrb[0].mxu0
  %v481 = vpop.f32.mrb[0].mxu0
  %482 = vdwg.mxu0
  %483 = vmatprep.subr.bf16.mxu0 0
  %484 = vmatpush1.bf16.msra.mxu0 %v363
  %485 = vmatprep.subr.bf16.mxu0 0
  %486 = vmatpush1.bf16.msra.mxu0 %v364
  %487 = vmatprep.subr.bf16.mxu0 0
  %488 = vmatpush1.bf16.msra.mxu0 %v365
  %489 = vmatprep.subr.bf16.mxu0 0
  %490 = vmatpush1.bf16.msra.mxu0 %v366
  %491 = vmatprep.subr.bf16.mxu0 0
  %492 = vmatpush1.bf16.msra.mxu0 %v367
  %493 = vmatprep.subr.bf16.mxu0 0
  %494 = vmatpush1.bf16.msra.mxu0 %v368
  %495 = vmatprep.subr.bf16.mxu0 0
  %496 = vmatpush1.bf16.msra.mxu0 %v369
  %497 = vmatprep.subr.bf16.mxu0 0
  %498 = vmatpush1.bf16.msra.mxu0 %v370
  %499 = vmatprep.subr.bf16.mxu0 0
  %500 = vmatpush1.bf16.msra.mxu0 %v371
  %501 = vmatprep.subr.bf16.mxu0 0
  %502 = vmatpush1.bf16.msra.mxu0 %v372
  %503 = vmatprep.subr.bf16.mxu0 0
  %504 = vmatpush1.bf16.msra.mxu0 %v373
  %505 = vmatprep.subr.bf16.mxu0 0
  %506 = vmatpush1.bf16.msra.mxu0 %v374
  %507 = vmatprep.subr.bf16.mxu0 0
  %508 = vmatpush1.bf16.msra.mxu0 %v375
  %509 = vmatprep.subr.bf16.mxu0 0
  %510 = vmatpush1.bf16.msra.mxu0 %v376
  %511 = vmatprep.subr.bf16.mxu0 0
  %512 = vmatpush1.bf16.msra.mxu0 %v377
  %513 = vmatprep.subr.bf16.mxu0 0
  %514 = vmatpush1.bf16.msra.mxu0 %v378
  %515 = vmatprep.mubr.bf16.mxu0 %v182
  %516 = vmatmul.mubr.bf16.gmra.mrb[0].mxu0 %v181
  %v517 = vpop.f32.mrb[0].mxu0
  %v518 = vadd.f32 %v446, %v517
  %v519 = vpop.f32.mrb[0].mxu0
  %v520 = vpop.f32.mrb[0].mxu0
  %v521 = vadd.f32 %v449, %v520
  %v522 = vpop.f32.mrb[0].mxu0
  %523 = vmatprep.mubr.bf16.mxu0 %v186
  %524 = vmatmul.mubr.bf16.gmra.mrb[0].mxu0 %v185
  %v525 = vpop.f32.mrb[0].mxu0
  %v526 = vadd.f32 %v454, %v525
  %v527 = vpop.f32.mrb[0].mxu0
  %v528 = vpop.f32.mrb[0].mxu0
  %v529 = vadd.f32 %v457, %v528
  %v530 = vpop.f32.mrb[0].mxu0
  %531 = vmatprep.mubr.bf16.mxu0 %v190
  %532 = vmatmul.mubr.bf16.gmra.mrb[0].mxu0 %v189
  %v533 = vpop.f32.mrb[0].mxu0
  %v534 = vadd.f32 %v462, %v533
  %v535 = vpop.f32.mrb[0].mxu0
  %v536 = vpop.f32.mrb[0].mxu0
  %v537 = vadd.f32 %v465, %v536
  %v538 = vpop.f32.mrb[0].mxu0
  %539 = vmatprep.mubr.bf16.mxu0 %v194
  %540 = vmatmul.mubr.bf16.gmra.mrb[0].mxu0 %v193
  %v541 = vpop.f32.mrb[0].mxu0
  %v542 = vadd.f32 %v470, %v541
  %v543 = vpop.f32.mrb[0].mxu0
  %v544 = vpop.f32.mrb[0].mxu0
  %v545 = vadd.f32 %v473, %v544
  %v546 = vpop.f32.mrb[0].mxu0
  %547 = vmatprep.mubr.bf16.mxu0 %v198
  %548 = vmatmul.mubr.bf16.gmra.mrb[0].mxu0 %v197
  %v549 = vpop.f32.mrb[0].mxu0
  %v550 = vadd.f32 %v478, %v549
  %v551 = vpop.f32.mrb[0].mxu0
  %v552 = vpop.f32.mrb[0].mxu0
  %v553 = vpop.f32.mrb[0].mxu0
  %554 = vdwg.mxu0
  %v555 = vmax.f32 %v518, 0.0
  %v556 = vmax.f32 %v521, 0.0
  %v557 = vmax.f32 %v526, 0.0
  %v558 = vmax.f32 %v529, 0.0
  %v559 = vmax.f32 %v534, 0.0
  %v560 = vmax.f32 %v537, 0.0
  %v561 = vmax.f32 %v542, 0.0
  %v562 = vmax.f32 %v545, 0.0
  %v563 = vmax.f32 %v550, 0.0
  %v564 = vpack.c.bf16 %v556, %v555
  %v565 = vpack.c.bf16 %v558, %v557
  %v566 = vpack.c.bf16 %v560, %v559
  %v567 = vpack.c.bf16 %v562, %v561
  %v568 = vpack.c.bf16 %v563, %v563
  %v569 = vld [vmem:[%s4] sm:$0xf]
  %v570 = vld [vmem:[%s4 + $0x4] sm:$0xf]
  %v571 = vld [vmem:[%s4 + $0x8] sm:$0xf]
  %v572 = vld [vmem:[%s4 + $0xc] sm:$0xf]
  %v573 = vld [vmem:[%s4 + $0x10] sm:$0xf]
  %v574 = vld [vmem:[%s4 + $0x14] sm:$0xf]
  %v575 = vld [vmem:[%s4 + $0x18] sm:$0xf]
  %v576 = vld [vmem:[%s4 + $0x1c] sm:$0xf]
  %v577 = vld [vmem:[%s4 + $0x20] sm:$0xf]
  %v578 = vld [vmem:[%s4 + $0x24] sm:$0xf]
  %v579 = vld [vmem:[%s4 + $0x28] sm:$0xf]
  %v580 = vld [vmem:[%s4 + $0x2c] sm:$0xf]
  %v581 = vld [vmem:[%s4 + $0x30] sm:$0xf]
  %v582 = vld [vmem:[%s4 + $0x34] sm:$0xf]
  %v583 = vld [vmem:[%s4 + $0x38] sm:$0xf]
  %v584 = vld [vmem:[%s4 + $0x3c] sm:$0xf]
  %v586 = vrot.slane %v564, 4
  %v595 = vunpack.c.l.b16 %v577
  %v596 = vunpack.c.l.b16 %v578
  %v597 = vunpack.c.l.b16 %v579
  %v598 = vunpack.c.l.b16 %v580
  %v599 = vunpack.c.l.b16 %v581
  %v600 = vunpack.c.l.b16 %v582
  %v601 = vunpack.c.l.b16 %v583
  %v602 = vunpack.c.l.b16 %v584
  %v603 = vpack.c.b16 %v596, %v595
  %v604 = vpack.c.b16 %v598, %v597
  %v605 = vpack.c.b16 %v600, %v599
  %v606 = vpack.c.b16 %v602, %v601
  %vm611 = vcmask 523264
  %v613 = vsel %vm611, %v586, 0
  %615 = vmatprep.subr.bf16.mxu0 0
  %616 = vmatpush1.bf16.msra.mxu0 %v603
  %617 = vmatprep.subr.bf16.mxu0 0
  %618 = vmatpush1.bf16.msra.mxu0 %v604
  %619 = vmatprep.subr.bf16.mxu0 0
  %620 = vmatpush1.bf16.msra.mxu0 %v605
  %621 = vmatprep.subr.bf16.mxu0 0
  %622 = vmatpush1.bf16.msra.mxu0 %v606
  %623 = vmatprep.subr.bf16.mxu0 0
  %624 = vmatpush1.bf16.msra.mxu0 0
  %625 = vmatprep.subr.bf16.mxu0 0
  %626 = vmatpush1.bf16.msra.mxu0 0
  %627 = vmatprep.subr.bf16.mxu0 0
  %628 = vmatpush1.bf16.msra.mxu0 0
  %629 = vmatprep.subr.bf16.mxu0 0
  %630 = vmatpush1.bf16.msra.mxu0 0
  %631 = vmatprep.subr.bf16.mxu0 0
  %632 = vmatpush1.bf16.msra.mxu0 0
  %633 = vmatprep.subr.bf16.mxu0 0
  %634 = vmatpush1.bf16.msra.mxu0 0
  %635 = vmatprep.subr.bf16.mxu0 0
  %636 = vmatpush1.bf16.msra.mxu0 0
  %637 = vmatprep.subr.bf16.mxu0 0
  %638 = vmatpush1.bf16.msra.mxu0 0
  %639 = vmatprep.subr.bf16.mxu0 0
  %640 = vmatpush1.bf16.msra.mxu0 0
  %641 = vmatprep.subr.bf16.mxu0 0
  %642 = vmatpush1.bf16.msra.mxu0 0
  %643 = vmatprep.subr.bf16.mxu0 0
  %644 = vmatpush1.bf16.msra.mxu0 0
  %645 = vmatprep.subr.bf16.mxu0 0
  %646 = vmatpush1.bf16.msra.mxu0 0
  %647 = vmatprep.mubr.bf16.mxu0 0
  %648 = vmatmul.mubr.bf16.gmra.mrb[0].mxu0 %v613
  %v649 = vpop.f32.mrb[0].mxu0
  %v650 = vadd.f32 0.0, %v649
  %v651 = vpop.f32.mrb[0].mxu0
  %v652 = vpop.f32.mrb[0].mxu0
  %v653 = vpop.f32.mrb[0].mxu0
  %654 = vdwg.mxu0
  %v663 = vunpack.c.l.b16 %v569
  %v664 = vunpack.c.l.b16 %v570
  %v665 = vunpack.c.l.b16 %v571
  %v666 = vunpack.c.l.b16 %v572
  %v667 = vunpack.c.l.b16 %v573
  %v668 = vunpack.c.l.b16 %v574
  %v669 = vunpack.c.l.b16 %v575
  %v670 = vunpack.c.l.b16 %v576
  %v671 = vpack.c.b16 %v664, %v663
  %v672 = vpack.c.b16 %v666, %v665
  %v673 = vpack.c.b16 %v668, %v667
  %v674 = vpack.c.b16 %v670, %v669
  %v680 = vsel %vm611, %v564, 0
  %682 = vmatprep.subr.bf16.mxu0 0
  %683 = vmatpush1.bf16.msra.mxu0 %v671
  %684 = vmatprep.subr.bf16.mxu0 0
  %685 = vmatpush1.bf16.msra.mxu0 %v672
  %686 = vmatprep.subr.bf16.mxu0 0
  %687 = vmatpush1.bf16.msra.mxu0 %v673
  %688 = vmatprep.subr.bf16.mxu0 0
  %689 = vmatpush1.bf16.msra.mxu0 %v674
  %690 = vmatprep.subr.bf16.mxu0 0
  %691 = vmatpush1.bf16.msra.mxu0 0
  %692 = vmatprep.subr.bf16.mxu0 0
  %693 = vmatpush1.bf16.msra.mxu0 0
  %694 = vmatprep.subr.bf16.mxu0 0
  %695 = vmatpush1.bf16.msra.mxu0 0
  %696 = vmatprep.subr.bf16.mxu0 0
  %697 = vmatpush1.bf16.msra.mxu0 0
  %698 = vmatprep.subr.bf16.mxu0 0
  %699 = vmatpush1.bf16.msra.mxu0 0
  %700 = vmatprep.subr.bf16.mxu0 0
  %701 = vmatpush1.bf16.msra.mxu0 0
  %702 = vmatprep.subr.bf16.mxu0 0
  %703 = vmatpush1.bf16.msra.mxu0 0
  %704 = vmatprep.subr.bf16.mxu0 0
  %705 = vmatpush1.bf16.msra.mxu0 0
  %706 = vmatprep.subr.bf16.mxu0 0
  %707 = vmatpush1.bf16.msra.mxu0 0
  %708 = vmatprep.subr.bf16.mxu0 0
  %709 = vmatpush1.bf16.msra.mxu0 0
  %710 = vmatprep.subr.bf16.mxu0 0
  %711 = vmatpush1.bf16.msra.mxu0 0
  %712 = vmatprep.subr.bf16.mxu0 0
  %713 = vmatpush1.bf16.msra.mxu0 0
  %714 = vmatprep.mubr.bf16.mxu0 0
  %715 = vmatmul.mubr.bf16.gmra.mrb[0].mxu0 %v680
  %v716 = vpop.f32.mrb[0].mxu0
  %v717 = vadd.f32 %v650, %v716
  %v718 = vpop.f32.mrb[0].mxu0
  %v719 = vpop.f32.mrb[0].mxu0
  %v720 = vpop.f32.mrb[0].mxu0
  %721 = vdwg.mxu0
  %v722 = vld [vmem:[%s4 + $0x40] sm:$0xf]
  %v723 = vld [vmem:[%s4 + $0x44] sm:$0xf]
  %v724 = vld [vmem:[%s4 + $0x48] sm:$0xf]
  %v725 = vld [vmem:[%s4 + $0x4c] sm:$0xf]
  %v726 = vld [vmem:[%s4 + $0x50] sm:$0xf]
  %v727 = vld [vmem:[%s4 + $0x54] sm:$0xf]
  %v728 = vld [vmem:[%s4 + $0x58] sm:$0xf]
  %v729 = vld [vmem:[%s4 + $0x5c] sm:$0xf]
  %v738 = vunpack.c.l.b16 %v722
  %v739 = vunpack.c.l.b16 %v723
  %v740 = vunpack.c.l.b16 %v724
  %v741 = vunpack.c.l.b16 %v725
  %v742 = vunpack.c.l.b16 %v726
  %v743 = vunpack.c.l.b16 %v727
  %v744 = vunpack.c.l.b16 %v728
  %v745 = vunpack.c.l.b16 %v729
  %v746 = vpack.c.b16 %v739, %v738
  %v747 = vpack.c.b16 %v741, %v740
  %v748 = vpack.c.b16 %v743, %v742
  %v749 = vpack.c.b16 %v745, %v744
  %v755 = vsel %vm611, %v565, 0
  %757 = vmatprep.subr.bf16.mxu0 0
  %758 = vmatpush1.bf16.msra.mxu0 %v746
  %759 = vmatprep.subr.bf16.mxu0 0
  %760 = vmatpush1.bf16.msra.mxu0 %v747
  %761 = vmatprep.subr.bf16.mxu0 0
  %762 = vmatpush1.bf16.msra.mxu0 %v748
  %763 = vmatprep.subr.bf16.mxu0 0
  %764 = vmatpush1.bf16.msra.mxu0 %v749
  %765 = vmatprep.subr.bf16.mxu0 0
  %766 = vmatpush1.bf16.msra.mxu0 0
  %767 = vmatprep.subr.bf16.mxu0 0
  %768 = vmatpush1.bf16.msra.mxu0 0
  %769 = vmatprep.subr.bf16.mxu0 0
  %770 = vmatpush1.bf16.msra.mxu0 0
  %771 = vmatprep.subr.bf16.mxu0 0
  %772 = vmatpush1.bf16.msra.mxu0 0
  %773 = vmatprep.subr.bf16.mxu0 0
  %774 = vmatpush1.bf16.msra.mxu0 0
  %775 = vmatprep.subr.bf16.mxu0 0
  %776 = vmatpush1.bf16.msra.mxu0 0
  %777 = vmatprep.subr.bf16.mxu0 0
  %778 = vmatpush1.bf16.msra.mxu0 0
  %779 = vmatprep.subr.bf16.mxu0 0
  %780 = vmatpush1.bf16.msra.mxu0 0
  %781 = vmatprep.subr.bf16.mxu0 0
  %782 = vmatpush1.bf16.msra.mxu0 0
  %783 = vmatprep.subr.bf16.mxu0 0
  %784 = vmatpush1.bf16.msra.mxu0 0
  %785 = vmatprep.subr.bf16.mxu0 0
  %786 = vmatpush1.bf16.msra.mxu0 0
  %787 = vmatprep.subr.bf16.mxu0 0
  %788 = vmatpush1.bf16.msra.mxu0 0
  %789 = vmatprep.mubr.bf16.mxu0 0
  %790 = vmatmul.mubr.bf16.gmra.mrb[0].mxu0 %v755
  %v791 = vpop.f32.mrb[0].mxu0
  %v792 = vadd.f32 0.0, %v791
  %v793 = vpop.f32.mrb[0].mxu0
  %v794 = vpop.f32.mrb[0].mxu0
  %v795 = vpop.f32.mrb[0].mxu0
  %796 = vdwg.mxu0
  %v797 = vadd.f32 %v717, %v792
  %v798 = vld [vmem:[%s4 + $0x60] sm:$0xf]
  %v799 = vld [vmem:[%s4 + $0x64] sm:$0xf]
  %v800 = vld [vmem:[%s4 + $0x68] sm:$0xf]
  %v801 = vld [vmem:[%s4 + $0x6c] sm:$0xf]
  %v802 = vld [vmem:[%s4 + $0x70] sm:$0xf]
  %v803 = vld [vmem:[%s4 + $0x74] sm:$0xf]
  %v804 = vld [vmem:[%s4 + $0x78] sm:$0xf]
  %v805 = vld [vmem:[%s4 + $0x7c] sm:$0xf]
  %v807 = vrot.slane %v565, 4
  %v816 = vunpack.c.l.b16 %v798
  %v817 = vunpack.c.l.b16 %v799
  %v818 = vunpack.c.l.b16 %v800
  %v819 = vunpack.c.l.b16 %v801
  %v820 = vunpack.c.l.b16 %v802
  %v821 = vunpack.c.l.b16 %v803
  %v822 = vunpack.c.l.b16 %v804
  %v823 = vunpack.c.l.b16 %v805
  %v824 = vpack.c.b16 %v817, %v816
  %v825 = vpack.c.b16 %v819, %v818
  %v826 = vpack.c.b16 %v821, %v820
  %v827 = vpack.c.b16 %v823, %v822
  %v833 = vsel %vm611, %v807, 0
  %835 = vmatprep.subr.bf16.mxu0 0
  %836 = vmatpush1.bf16.msra.mxu0 %v824
  %837 = vmatprep.subr.bf16.mxu0 0
  %838 = vmatpush1.bf16.msra.mxu0 %v825
  %839 = vmatprep.subr.bf16.mxu0 0
  %840 = vmatpush1.bf16.msra.mxu0 %v826
  %841 = vmatprep.subr.bf16.mxu0 0
  %842 = vmatpush1.bf16.msra.mxu0 %v827
  %843 = vmatprep.subr.bf16.mxu0 0
  %844 = vmatpush1.bf16.msra.mxu0 0
  %845 = vmatprep.subr.bf16.mxu0 0
  %846 = vmatpush1.bf16.msra.mxu0 0
  %847 = vmatprep.subr.bf16.mxu0 0
  %848 = vmatpush1.bf16.msra.mxu0 0
  %849 = vmatprep.subr.bf16.mxu0 0
  %850 = vmatpush1.bf16.msra.mxu0 0
  %851 = vmatprep.subr.bf16.mxu0 0
  %852 = vmatpush1.bf16.msra.mxu0 0
  %853 = vmatprep.subr.bf16.mxu0 0
  %854 = vmatpush1.bf16.msra.mxu0 0
  %855 = vmatprep.subr.bf16.mxu0 0
  %856 = vmatpush1.bf16.msra.mxu0 0
  %857 = vmatprep.subr.bf16.mxu0 0
  %858 = vmatpush1.bf16.msra.mxu0 0
  %859 = vmatprep.subr.bf16.mxu0 0
  %860 = vmatpush1.bf16.msra.mxu0 0
  %861 = vmatprep.subr.bf16.mxu0 0
  %862 = vmatpush1.bf16.msra.mxu0 0
  %863 = vmatprep.subr.bf16.mxu0 0
  %864 = vmatpush1.bf16.msra.mxu0 0
  %865 = vmatprep.subr.bf16.mxu0 0
  %866 = vmatpush1.bf16.msra.mxu0 0
  %867 = vmatprep.mubr.bf16.mxu0 0
  %868 = vmatmul.mubr.bf16.gmra.mrb[0].mxu0 %v833
  %v869 = vpop.f32.mrb[0].mxu0
  %v870 = vadd.f32 0.0, %v869
  %v871 = vpop.f32.mrb[0].mxu0
  %v872 = vpop.f32.mrb[0].mxu0
  %v873 = vpop.f32.mrb[0].mxu0
  %874 = vdwg.mxu0
  %v875 = vadd.f32 %v797, %v870
  %v876 = vld [vmem:[%s4 + $0x80] sm:$0xf]
  %v877 = vld [vmem:[%s4 + $0x84] sm:$0xf]
  %v878 = vld [vmem:[%s4 + $0x88] sm:$0xf]
  %v879 = vld [vmem:[%s4 + $0x8c] sm:$0xf]
  %v880 = vld [vmem:[%s4 + $0x90] sm:$0xf]
  %v881 = vld [vmem:[%s4 + $0x94] sm:$0xf]
  %v882 = vld [vmem:[%s4 + $0x98] sm:$0xf]
  %v883 = vld [vmem:[%s4 + $0x9c] sm:$0xf]
  %v892 = vunpack.c.l.b16 %v876
  %v893 = vunpack.c.l.b16 %v877
  %v894 = vunpack.c.l.b16 %v878
  %v895 = vunpack.c.l.b16 %v879
  %v896 = vunpack.c.l.b16 %v880
  %v897 = vunpack.c.l.b16 %v881
  %v898 = vunpack.c.l.b16 %v882
  %v899 = vunpack.c.l.b16 %v883
  %v900 = vpack.c.b16 %v893, %v892
  %v901 = vpack.c.b16 %v895, %v894
  %v902 = vpack.c.b16 %v897, %v896
  %v903 = vpack.c.b16 %v899, %v898
  %v909 = vsel %vm611, %v566, 0
  %911 = vmatprep.subr.bf16.mxu0 0
  %912 = vmatpush1.bf16.msra.mxu0 %v900
  %913 = vmatprep.subr.bf16.mxu0 0
  %914 = vmatpush1.bf16.msra.mxu0 %v901
  %915 = vmatprep.subr.bf16.mxu0 0
  %916 = vmatpush1.bf16.msra.mxu0 %v902
  %917 = vmatprep.subr.bf16.mxu0 0
  %918 = vmatpush1.bf16.msra.mxu0 %v903
  %919 = vmatprep.subr.bf16.mxu0 0
  %920 = vmatpush1.bf16.msra.mxu0 0
  %921 = vmatprep.subr.bf16.mxu0 0
  %922 = vmatpush1.bf16.msra.mxu0 0
  %923 = vmatprep.subr.bf16.mxu0 0
  %924 = vmatpush1.bf16.msra.mxu0 0
  %925 = vmatprep.subr.bf16.mxu0 0
  %926 = vmatpush1.bf16.msra.mxu0 0
  %927 = vmatprep.subr.bf16.mxu0 0
  %928 = vmatpush1.bf16.msra.mxu0 0
  %929 = vmatprep.subr.bf16.mxu0 0
  %930 = vmatpush1.bf16.msra.mxu0 0
  %931 = vmatprep.subr.bf16.mxu0 0
  %932 = vmatpush1.bf16.msra.mxu0 0
  %933 = vmatprep.subr.bf16.mxu0 0
  %934 = vmatpush1.bf16.msra.mxu0 0
  %935 = vmatprep.subr.bf16.mxu0 0
  %936 = vmatpush1.bf16.msra.mxu0 0
  %937 = vmatprep.subr.bf16.mxu0 0
  %938 = vmatpush1.bf16.msra.mxu0 0
  %939 = vmatprep.subr.bf16.mxu0 0
  %940 = vmatpush1.bf16.msra.mxu0 0
  %941 = vmatprep.subr.bf16.mxu0 0
  %942 = vmatpush1.bf16.msra.mxu0 0
  %943 = vmatprep.mubr.bf16.mxu0 0
  %944 = vmatmul.mubr.bf16.gmra.mrb[0].mxu0 %v909
  %v945 = vpop.f32.mrb[0].mxu0
  %v946 = vadd.f32 0.0, %v945
  %v947 = vpop.f32.mrb[0].mxu0
  %v948 = vpop.f32.mrb[0].mxu0
  %v949 = vpop.f32.mrb[0].mxu0
  %950 = vdwg.mxu0
  %v951 = vadd.f32 %v875, %v946
  %v952 = vld [vmem:[%s4 + $0xa0] sm:$0xf]
  %v953 = vld [vmem:[%s4 + $0xa4] sm:$0xf]
  %v954 = vld [vmem:[%s4 + $0xa8] sm:$0xf]
  %v955 = vld [vmem:[%s4 + $0xac] sm:$0xf]
  %v956 = vld [vmem:[%s4 + $0xb0] sm:$0xf]
  %v957 = vld [vmem:[%s4 + $0xb4] sm:$0xf]
  %v958 = vld [vmem:[%s4 + $0xb8] sm:$0xf]
  %v959 = vld [vmem:[%s4 + $0xbc] sm:$0xf]
  %v961 = vrot.slane %v566, 4
  %v970 = vunpack.c.l.b16 %v952
  %v971 = vunpack.c.l.b16 %v953
  %v972 = vunpack.c.l.b16 %v954
  %v973 = vunpack.c.l.b16 %v955
  %v974 = vunpack.c.l.b16 %v956
  %v975 = vunpack.c.l.b16 %v957
  %v976 = vunpack.c.l.b16 %v958
  %v977 = vunpack.c.l.b16 %v959
  %v978 = vpack.c.b16 %v971, %v970
  %v979 = vpack.c.b16 %v973, %v972
  %v980 = vpack.c.b16 %v975, %v974
  %v981 = vpack.c.b16 %v977, %v976
  %v987 = vsel %vm611, %v961, 0
  %989 = vmatprep.subr.bf16.mxu0 0
  %990 = vmatpush1.bf16.msra.mxu0 %v978
  %991 = vmatprep.subr.bf16.mxu0 0
  %992 = vmatpush1.bf16.msra.mxu0 %v979
  %993 = vmatprep.subr.bf16.mxu0 0
  %994 = vmatpush1.bf16.msra.mxu0 %v980
  %995 = vmatprep.subr.bf16.mxu0 0
  %996 = vmatpush1.bf16.msra.mxu0 %v981
  %997 = vmatprep.subr.bf16.mxu0 0
  %998 = vmatpush1.bf16.msra.mxu0 0
  %999 = vmatprep.subr.bf16.mxu0 0
  %1000 = vmatpush1.bf16.msra.mxu0 0
  %1001 = vmatprep.subr.bf16.mxu0 0
  %1002 = vmatpush1.bf16.msra.mxu0 0
  %1003 = vmatprep.subr.bf16.mxu0 0
  %1004 = vmatpush1.bf16.msra.mxu0 0
  %1005 = vmatprep.subr.bf16.mxu0 0
  %1006 = vmatpush1.bf16.msra.mxu0 0
  %1007 = vmatprep.subr.bf16.mxu0 0
  %1008 = vmatpush1.bf16.msra.mxu0 0
  %1009 = vmatprep.subr.bf16.mxu0 0
  %1010 = vmatpush1.bf16.msra.mxu0 0
  %1011 = vmatprep.subr.bf16.mxu0 0
  %1012 = vmatpush1.bf16.msra.mxu0 0
  %1013 = vmatprep.subr.bf16.mxu0 0
  %1014 = vmatpush1.bf16.msra.mxu0 0
  %1015 = vmatprep.subr.bf16.mxu0 0
  %1016 = vmatpush1.bf16.msra.mxu0 0
  %1017 = vmatprep.subr.bf16.mxu0 0
  %1018 = vmatpush1.bf16.msra.mxu0 0
  %1019 = vmatprep.subr.bf16.mxu0 0
  %1020 = vmatpush1.bf16.msra.mxu0 0
  %1021 = vmatprep.mubr.bf16.mxu0 0
  %1022 = vmatmul.mubr.bf16.gmra.mrb[0].mxu0 %v987
  %v1023 = vpop.f32.mrb[0].mxu0
  %v1024 = vadd.f32 0.0, %v1023
  %v1025 = vpop.f32.mrb[0].mxu0
  %v1026 = vpop.f32.mrb[0].mxu0
  %v1027 = vpop.f32.mrb[0].mxu0
  %1028 = vdwg.mxu0
  %v1029 = vadd.f32 %v951, %v1024
  %v1030 = vld [vmem:[%s4 + $0xc0] sm:$0xf]
  %v1031 = vld [vmem:[%s4 + $0xc4] sm:$0xf]
  %v1032 = vld [vmem:[%s4 + $0xc8] sm:$0xf]
  %v1033 = vld [vmem:[%s4 + $0xcc] sm:$0xf]
  %v1034 = vld [vmem:[%s4 + $0xd0] sm:$0xf]
  %v1035 = vld [vmem:[%s4 + $0xd4] sm:$0xf]
  %v1036 = vld [vmem:[%s4 + $0xd8] sm:$0xf]
  %v1037 = vld [vmem:[%s4 + $0xdc] sm:$0xf]
  %v1046 = vunpack.c.l.b16 %v1030
  %v1047 = vunpack.c.l.b16 %v1031
  %v1048 = vunpack.c.l.b16 %v1032
  %v1049 = vunpack.c.l.b16 %v1033
  %v1050 = vunpack.c.l.b16 %v1034
  %v1051 = vunpack.c.l.b16 %v1035
  %v1052 = vunpack.c.l.b16 %v1036
  %v1053 = vunpack.c.l.b16 %v1037
  %v1054 = vpack.c.b16 %v1047, %v1046
  %v1055 = vpack.c.b16 %v1049, %v1048
  %v1056 = vpack.c.b16 %v1051, %v1050
  %v1057 = vpack.c.b16 %v1053, %v1052
  %v1063 = vsel %vm611, %v567, 0
  %1065 = vmatprep.subr.bf16.mxu0 0
  %1066 = vmatpush1.bf16.msra.mxu0 %v1054
  %1067 = vmatprep.subr.bf16.mxu0 0
  %1068 = vmatpush1.bf16.msra.mxu0 %v1055
  %1069 = vmatprep.subr.bf16.mxu0 0
  %1070 = vmatpush1.bf16.msra.mxu0 %v1056
  %1071 = vmatprep.subr.bf16.mxu0 0
  %1072 = vmatpush1.bf16.msra.mxu0 %v1057
  %1073 = vmatprep.subr.bf16.mxu0 0
  %1074 = vmatpush1.bf16.msra.mxu0 0
  %1075 = vmatprep.subr.bf16.mxu0 0
  %1076 = vmatpush1.bf16.msra.mxu0 0
  %1077 = vmatprep.subr.bf16.mxu0 0
  %1078 = vmatpush1.bf16.msra.mxu0 0
  %1079 = vmatprep.subr.bf16.mxu0 0
  %1080 = vmatpush1.bf16.msra.mxu0 0
  %1081 = vmatprep.subr.bf16.mxu0 0
  %1082 = vmatpush1.bf16.msra.mxu0 0
  %1083 = vmatprep.subr.bf16.mxu0 0
  %1084 = vmatpush1.bf16.msra.mxu0 0
  %1085 = vmatprep.subr.bf16.mxu0 0
  %1086 = vmatpush1.bf16.msra.mxu0 0
  %1087 = vmatprep.subr.bf16.mxu0 0
  %1088 = vmatpush1.bf16.msra.mxu0 0
  %1089 = vmatprep.subr.bf16.mxu0 0
  %1090 = vmatpush1.bf16.msra.mxu0 0
  %1091 = vmatprep.subr.bf16.mxu0 0
  %1092 = vmatpush1.bf16.msra.mxu0 0
  %1093 = vmatprep.subr.bf16.mxu0 0
  %1094 = vmatpush1.bf16.msra.mxu0 0
  %1095 = vmatprep.subr.bf16.mxu0 0
  %1096 = vmatpush1.bf16.msra.mxu0 0
  %1097 = vmatprep.mubr.bf16.mxu0 0
  %1098 = vmatmul.mubr.bf16.gmra.mrb[0].mxu0 %v1063
  %v1099 = vpop.f32.mrb[0].mxu0
  %v1100 = vadd.f32 0.0, %v1099
  %v1101 = vpop.f32.mrb[0].mxu0
  %v1102 = vpop.f32.mrb[0].mxu0
  %v1103 = vpop.f32.mrb[0].mxu0
  %1104 = vdwg.mxu0
  %v1105 = vadd.f32 %v1029, %v1100
  %v1106 = vld [vmem:[%s4 + $0xe0] sm:$0xf]
  %v1107 = vld [vmem:[%s4 + $0xe4] sm:$0xf]
  %v1108 = vld [vmem:[%s4 + $0xe8] sm:$0xf]
  %v1109 = vld [vmem:[%s4 + $0xec] sm:$0xf]
  %v1110 = vld [vmem:[%s4 + $0xf0] sm:$0xf]
  %v1111 = vld [vmem:[%s4 + $0xf4] sm:$0xf]
  %v1112 = vld [vmem:[%s4 + $0xf8] sm:$0xf]
  %v1113 = vld [vmem:[%s4 + $0xfc] sm:$0xf]
  %v1115 = vrot.slane %v567, 4
  %v1124 = vunpack.c.l.b16 %v1106
  %v1125 = vunpack.c.l.b16 %v1107
  %v1126 = vunpack.c.l.b16 %v1108
  %v1127 = vunpack.c.l.b16 %v1109
  %v1128 = vunpack.c.l.b16 %v1110
  %v1129 = vunpack.c.l.b16 %v1111
  %v1130 = vunpack.c.l.b16 %v1112
  %v1131 = vunpack.c.l.b16 %v1113
  %v1132 = vpack.c.b16 %v1125, %v1124
  %v1133 = vpack.c.b16 %v1127, %v1126
  %v1134 = vpack.c.b16 %v1129, %v1128
  %v1135 = vpack.c.b16 %v1131, %v1130
  %v1141 = vsel %vm611, %v1115, 0
  %1143 = vmatprep.subr.bf16.mxu0 0
  %1144 = vmatpush1.bf16.msra.mxu0 %v1132
  %1145 = vmatprep.subr.bf16.mxu0 0
  %1146 = vmatpush1.bf16.msra.mxu0 %v1133
  %1147 = vmatprep.subr.bf16.mxu0 0
  %1148 = vmatpush1.bf16.msra.mxu0 %v1134
  %1149 = vmatprep.subr.bf16.mxu0 0
  %1150 = vmatpush1.bf16.msra.mxu0 %v1135
  %1151 = vmatprep.subr.bf16.mxu0 0
  %1152 = vmatpush1.bf16.msra.mxu0 0
  %1153 = vmatprep.subr.bf16.mxu0 0
  %1154 = vmatpush1.bf16.msra.mxu0 0
  %1155 = vmatprep.subr.bf16.mxu0 0
  %1156 = vmatpush1.bf16.msra.mxu0 0
  %1157 = vmatprep.subr.bf16.mxu0 0
  %1158 = vmatpush1.bf16.msra.mxu0 0
  %1159 = vmatprep.subr.bf16.mxu0 0
  %1160 = vmatpush1.bf16.msra.mxu0 0
  %1161 = vmatprep.subr.bf16.mxu0 0
  %1162 = vmatpush1.bf16.msra.mxu0 0
  %1163 = vmatprep.subr.bf16.mxu0 0
  %1164 = vmatpush1.bf16.msra.mxu0 0
  %1165 = vmatprep.subr.bf16.mxu0 0
  %1166 = vmatpush1.bf16.msra.mxu0 0
  %1167 = vmatprep.subr.bf16.mxu0 0
  %1168 = vmatpush1.bf16.msra.mxu0 0
  %1169 = vmatprep.subr.bf16.mxu0 0
  %1170 = vmatpush1.bf16.msra.mxu0 0
  %1171 = vmatprep.subr.bf16.mxu0 0
  %1172 = vmatpush1.bf16.msra.mxu0 0
  %1173 = vmatprep.subr.bf16.mxu0 0
  %1174 = vmatpush1.bf16.msra.mxu0 0
  %1175 = vmatprep.mubr.bf16.mxu0 0
  %1176 = vmatmul.mubr.bf16.gmra.mrb[0].mxu0 %v1141
  %v1177 = vpop.f32.mrb[0].mxu0
  %v1178 = vadd.f32 0.0, %v1177
  %v1179 = vpop.f32.mrb[0].mxu0
  %v1180 = vpop.f32.mrb[0].mxu0
  %v1181 = vpop.f32.mrb[0].mxu0
  %1182 = vdwg.mxu0
  %v1183 = vadd.f32 %v1105, %v1178
  %v1184 = vld [vmem:[%s4 + $0x100] sm:$0xf]
  %v1185 = vld [vmem:[%s4 + $0x104] sm:$0xf]
  %v1186 = vld [vmem:[%s4 + $0x108] sm:$0xf]
  %v1187 = vld [vmem:[%s4 + $0x10c] sm:$0xf]
  %v1188 = vld [vmem:[%s4 + $0x110] sm:$0xf]
  %v1189 = vld [vmem:[%s4 + $0x114] sm:$0xf]
  %v1190 = vld [vmem:[%s4 + $0x118] sm:$0xf]
  %v1191 = vld [vmem:[%s4 + $0x11c] sm:$0xf]
  %v1200 = vunpack.c.l.b16 %v1184
  %v1201 = vunpack.c.l.b16 %v1185
  %v1202 = vunpack.c.l.b16 %v1186
  %v1203 = vunpack.c.l.b16 %v1187
  %v1204 = vunpack.c.l.b16 %v1188
  %v1205 = vunpack.c.l.b16 %v1189
  %v1206 = vunpack.c.l.b16 %v1190
  %v1207 = vunpack.c.l.b16 %v1191
  %v1208 = vpack.c.b16 %v1201, %v1200
  %v1209 = vpack.c.b16 %v1203, %v1202
  %v1210 = vpack.c.b16 %v1205, %v1204
  %v1211 = vpack.c.b16 %v1207, %v1206
  %v1217 = vsel %vm611, %v568, 0
  %1219 = vmatprep.subr.bf16.mxu0 0
  %1220 = vmatpush1.bf16.msra.mxu0 %v1208
  %1221 = vmatprep.subr.bf16.mxu0 0
  %1222 = vmatpush1.bf16.msra.mxu0 %v1209
  %1223 = vmatprep.subr.bf16.mxu0 0
  %1224 = vmatpush1.bf16.msra.mxu0 %v1210
  %1225 = vmatprep.subr.bf16.mxu0 0
  %1226 = vmatpush1.bf16.msra.mxu0 %v1211
  %1227 = vmatprep.subr.bf16.mxu0 0
  %1228 = vmatpush1.bf16.msra.mxu0 0
  %1229 = vmatprep.subr.bf16.mxu0 0
  %1230 = vmatpush1.bf16.msra.mxu0 0
  %1231 = vmatprep.subr.bf16.mxu0 0
  %1232 = vmatpush1.bf16.msra.mxu0 0
  %1233 = vmatprep.subr.bf16.mxu0 0
  %1234 = vmatpush1.bf16.msra.mxu0 0
  %1235 = vmatprep.subr.bf16.mxu0 0
  %1236 = vmatpush1.bf16.msra.mxu0 0
  %1237 = vmatprep.subr.bf16.mxu0 0
  %1238 = vmatpush1.bf16.msra.mxu0 0
  %1239 = vmatprep.subr.bf16.mxu0 0
  %1240 = vmatpush1.bf16.msra.mxu0 0
  %1241 = vmatprep.subr.bf16.mxu0 0
  %1242 = vmatpush1.bf16.msra.mxu0 0
  %1243 = vmatprep.subr.bf16.mxu0 0
  %1244 = vmatpush1.bf16.msra.mxu0 0
  %1245 = vmatprep.subr.bf16.mxu0 0
  %1246 = vmatpush1.bf16.msra.mxu0 0
  %1247 = vmatprep.subr.bf16.mxu0 0
  %1248 = vmatpush1.bf16.msra.mxu0 0
  %1249 = vmatprep.subr.bf16.mxu0 0
  %1250 = vmatpush1.bf16.msra.mxu0 0
  %1251 = vmatprep.mubr.bf16.mxu0 0
  %1252 = vmatmul.mubr.bf16.gmra.mrb[0].mxu0 %v1217
  %v1253 = vpop.f32.mrb[0].mxu0
  %v1254 = vadd.f32 0.0, %v1253
  %v1255 = vpop.f32.mrb[0].mxu0
  %v1256 = vpop.f32.mrb[0].mxu0
  %v1257 = vpop.f32.mrb[0].mxu0
  %1258 = vdwg.mxu0
  %v1259 = vadd.f32 %v1183, %v1254
  %v1260 = vld [vmem:[%s5] sm:$0x1]
  %v1262 = vlaneseq
  %v1263 = vshrl.u32 %v1262, 7
  %v1264 = vsub.s32 0, %v1263
  %v1265 = vrot.slane %v1260, %v1264
  %v1267 = vadd.f32 %v1259, %v1265
  %v1268 = vmax.f32 %v1267, 0.0
  %v1269 = vpack.c.bf16 %v1268, %v1268
  %v1270 = vld [vmem:[%s6] sm:$0xff]
  %v1271 = vld [vmem:[%s6 + $0x8] sm:$0xff]
  %v1272 = vld [vmem:[%s6 + $0x10] sm:$0xff]
  %v1273 = vld [vmem:[%s6 + $0x18] sm:$0xff]
  %v1274 = vld [vmem:[%s6 + $0x20] sm:$0xff]
  %v1275 = vld [vmem:[%s6 + $0x28] sm:$0xff]
  %v1276 = vld [vmem:[%s6 + $0x30] sm:$0xff]
  %v1277 = vld [vmem:[%s6 + $0x38] sm:$0xff]
  %v1278 = vld [vmem:[%s6 + $0x40] sm:$0xff]
  %v1279 = vld [vmem:[%s6 + $0x48] sm:$0xff]
  %v1280 = vld [vmem:[%s6 + $0x50] sm:$0xff]
  %v1281 = vld [vmem:[%s6 + $0x58] sm:$0xff]
  %v1282 = vld [vmem:[%s6 + $0x60] sm:$0xff]
  %v1283 = vld [vmem:[%s6 + $0x68] sm:$0xff]
  %v1284 = vld [vmem:[%s6 + $0x70] sm:$0xff]
  %v1285 = vld [vmem:[%s6 + $0x78] sm:$0xff]
  %v1286 = vld [vmem:[%s6 + $0x80] sm:$0xff]
  %v1287 = vld [vmem:[%s6 + $0x88] sm:$0xff]
  %v1288 = vld [vmem:[%s6 + $0x90] sm:$0xff]
  %v1289 = vld [vmem:[%s6 + $0x98] sm:$0xff]
  %v1290 = vld [vmem:[%s6 + $0xa0] sm:$0xff]
  %v1291 = vld [vmem:[%s6 + $0xa8] sm:$0xff]
  %v1292 = vld [vmem:[%s6 + $0xb0] sm:$0xff]
  %v1293 = vld [vmem:[%s6 + $0xb8] sm:$0xff]
  %v1294 = vld [vmem:[%s6 + $0xc0] sm:$0xff]
  %v1295 = vld [vmem:[%s6 + $0xc8] sm:$0xff]
  %v1296 = vld [vmem:[%s6 + $0xd0] sm:$0xff]
  %v1297 = vld [vmem:[%s6 + $0xd8] sm:$0xff]
  %v1298 = vld [vmem:[%s6 + $0xe0] sm:$0xff]
  %v1299 = vld [vmem:[%s6 + $0xe8] sm:$0xff]
  %v1300 = vld [vmem:[%s6 + $0xf0] sm:$0xff]
  %v1301 = vld [vmem:[%s6 + $0xf8] sm:$0xff]
  %v1302 = vld [vmem:[%s1] sm:$0xf]
  %v1303 = vld [vmem:[%s6 + $0x100] sm:$0xff]
  %v1304 = vld [vmem:[%s6 + $0x108] sm:$0xff]
  %v1305 = vld [vmem:[%s6 + $0x110] sm:$0xff]
  %v1306 = vld [vmem:[%s6 + $0x118] sm:$0xff]
  %v1307 = vld [vmem:[%s6 + $0x120] sm:$0xff]
  %v1308 = vld [vmem:[%s6 + $0x128] sm:$0xff]
  %v1309 = vld [vmem:[%s6 + $0x130] sm:$0xff]
  %v1310 = vld [vmem:[%s6 + $0x138] sm:$0xff]
  %v1311 = vld [vmem:[%s6 + $0x140] sm:$0xff]
  %v1312 = vld [vmem:[%s6 + $0x148] sm:$0xff]
  %v1313 = vld [vmem:[%s6 + $0x150] sm:$0xff]
  %v1314 = vld [vmem:[%s6 + $0x158] sm:$0xff]
  %v1315 = vld [vmem:[%s6 + $0x160] sm:$0xff]
  %v1316 = vld [vmem:[%s6 + $0x168] sm:$0xff]
  %v1317 = vld [vmem:[%s6 + $0x170] sm:$0xff]
  %v1318 = vld [vmem:[%s6 + $0x178] sm:$0xff]
  %v1319 = vld [vmem:[%s6 + $0x180] sm:$0xff]
  %v1320 = vld [vmem:[%s6 + $0x188] sm:$0xff]
  %v1321 = vld [vmem:[%s6 + $0x190] sm:$0xff]
  %v1322 = vld [vmem:[%s6 + $0x198] sm:$0xff]
  %v1323 = vld [vmem:[%s6 + $0x1a0] sm:$0xff]
  %v1324 = vld [vmem:[%s6 + $0x1a8] sm:$0xff]
  %v1325 = vld [vmem:[%s6 + $0x1b0] sm:$0xff]
  %v1326 = vld [vmem:[%s6 + $0x1b8] sm:$0xff]
  %v1327 = vld [vmem:[%s6 + $0x1c0] sm:$0xff]
  %v1328 = vld [vmem:[%s6 + $0x1c8] sm:$0xff]
  %v1329 = vld [vmem:[%s6 + $0x1d0] sm:$0xff]
  %v1330 = vld [vmem:[%s6 + $0x1d8] sm:$0xff]
  %v1331 = vld [vmem:[%s6 + $0x1e0] sm:$0xff]
  %v1332 = vld [vmem:[%s6 + $0x1e8] sm:$0xff]
  %v1333 = vld [vmem:[%s6 + $0x1f0] sm:$0xff]
  %v1334 = vld [vmem:[%s6 + $0x1f8] sm:$0xff]
  %v1367 = vunpack.c.l.b16 %v1303
  %v1368 = vunpack.c.h.b16 %v1303
  %v1369 = vunpack.c.l.b16 %v1304
  %v1370 = vunpack.c.h.b16 %v1304
  %v1371 = vunpack.c.l.b16 %v1305
  %v1372 = vunpack.c.h.b16 %v1305
  %v1373 = vunpack.c.l.b16 %v1306
  %v1374 = vunpack.c.h.b16 %v1306
  %v1375 = vunpack.c.l.b16 %v1307
  %v1376 = vunpack.c.h.b16 %v1307
  %v1377 = vunpack.c.l.b16 %v1308
  %v1378 = vunpack.c.h.b16 %v1308
  %v1379 = vunpack.c.l.b16 %v1309
  %v1380 = vunpack.c.h.b16 %v1309
  %v1381 = vunpack.c.l.b16 %v1310
  %v1382 = vunpack.c.h.b16 %v1310
  %v1383 = vunpack.c.l.b16 %v1311
  %v1384 = vunpack.c.h.b16 %v1311
  %v1385 = vunpack.c.l.b16 %v1312
  %v1386 = vunpack.c.h.b16 %v1312
  %v1387 = vunpack.c.l.b16 %v1313
  %v1388 = vunpack.c.h.b16 %v1313
  %v1389 = vunpack.c.l.b16 %v1314
  %v1390 = vunpack.c.h.b16 %v1314
  %v1391 = vunpack.c.l.b16 %v1315
  %v1392 = vunpack.c.h.b16 %v1315
  %v1393 = vunpack.c.l.b16 %v1316
  %v1394 = vunpack.c.h.b16 %v1316
  %v1395 = vunpack.c.l.b16 %v1317
  %v1396 = vunpack.c.h.b16 %v1317
  %v1397 = vunpack.c.l.b16 %v1318
  %v1398 = vunpack.c.h.b16 %v1318
  %v1399 = vunpack.c.l.b16 %v1319
  %v1400 = vunpack.c.h.b16 %v1319
  %v1401 = vunpack.c.l.b16 %v1320
  %v1402 = vunpack.c.h.b16 %v1320
  %v1403 = vunpack.c.l.b16 %v1321
  %v1404 = vunpack.c.h.b16 %v1321
  %v1405 = vunpack.c.l.b16 %v1322
  %v1406 = vunpack.c.h.b16 %v1322
  %v1407 = vunpack.c.l.b16 %v1323
  %v1408 = vunpack.c.h.b16 %v1323
  %v1409 = vunpack.c.l.b16 %v1324
  %v1410 = vunpack.c.h.b16 %v1324
  %v1411 = vunpack.c.l.b16 %v1325
  %v1412 = vunpack.c.h.b16 %v1325
  %v1413 = vunpack.c.l.b16 %v1326
  %v1414 = vunpack.c.h.b16 %v1326
  %v1415 = vunpack.c.l.b16 %v1327
  %v1416 = vunpack.c.h.b16 %v1327
  %v1417 = vunpack.c.l.b16 %v1328
  %v1418 = vunpack.c.h.b16 %v1328
  %v1419 = vunpack.c.l.b16 %v1329
  %v1420 = vunpack.c.h.b16 %v1329
  %v1421 = vunpack.c.l.b16 %v1330
  %v1422 = vunpack.c.h.b16 %v1330
  %v1423 = vunpack.c.l.b16 %v1331
  %v1424 = vunpack.c.h.b16 %v1331
  %v1425 = vunpack.c.l.b16 %v1332
  %v1426 = vunpack.c.h.b16 %v1332
  %v1427 = vunpack.c.l.b16 %v1333
  %v1428 = vunpack.c.h.b16 %v1333
  %v1429 = vunpack.c.l.b16 %v1334
  %v1430 = vunpack.c.h.b16 %v1334
  %v1431 = vpack.c.b16 %v1375, %v1367
  %v1432 = vpack.c.b16 %v1376, %v1368
  %v1433 = vpack.c.b16 %v1377, %v1369
  %v1434 = vpack.c.b16 %v1378, %v1370
  %v1435 = vpack.c.b16 %v1379, %v1371
  %v1436 = vpack.c.b16 %v1380, %v1372
  %v1437 = vpack.c.b16 %v1381, %v1373
  %v1438 = vpack.c.b16 %v1382, %v1374
  %v1439 = vpack.c.b16 %v1391, %v1383
  %v1440 = vpack.c.b16 %v1392, %v1384
  %v1441 = vpack.c.b16 %v1393, %v1385
  %v1442 = vpack.c.b16 %v1394, %v1386
  %v1443 = vpack.c.b16 %v1395, %v1387
  %v1444 = vpack.c.b16 %v1396, %v1388
  %v1445 = vpack.c.b16 %v1397, %v1389
  %v1446 = vpack.c.b16 %v1398, %v1390
  %v1447 = vpack.c.b16 %v1407, %v1399
  %v1448 = vpack.c.b16 %v1408, %v1400
  %v1449 = vpack.c.b16 %v1409, %v1401
  %v1450 = vpack.c.b16 %v1410, %v1402
  %v1451 = vpack.c.b16 %v1411, %v1403
  %v1452 = vpack.c.b16 %v1412, %v1404
  %v1453 = vpack.c.b16 %v1413, %v1405
  %v1454 = vpack.c.b16 %v1414, %v1406
  %v1455 = vpack.c.b16 %v1423, %v1415
  %v1456 = vpack.c.b16 %v1424, %v1416
  %v1457 = vpack.c.b16 %v1425, %v1417
  %v1458 = vpack.c.b16 %v1426, %v1418
  %v1459 = vpack.c.b16 %v1427, %v1419
  %v1460 = vpack.c.b16 %v1428, %v1420
  %v1461 = vpack.c.b16 %v1429, %v1421
  %v1462 = vpack.c.b16 %v1430, %v1422
  %v1496 = vsel %vm611, %v1302, 0
  %1498 = vmatprep.subr.bf16.mxu0 %v1432
  %1499 = vmatpush1.bf16.msra.mxu0 %v1431
  %1500 = vmatprep.subr.bf16.mxu0 %v1440
  %1501 = vmatpush1.bf16.msra.mxu0 %v1439
  %1502 = vmatprep.subr.bf16.mxu0 %v1448
  %1503 = vmatpush1.bf16.msra.mxu0 %v1447
  %1504 = vmatprep.subr.bf16.mxu0 %v1456
  %1505 = vmatpush1.bf16.msra.mxu0 %v1455
  %1506 = vmatprep.subr.bf16.mxu0 0
  %1507 = vmatpush1.bf16.msra.mxu0 0
  %1508 = vmatprep.subr.bf16.mxu0 0
  %1509 = vmatpush1.bf16.msra.mxu0 0
  %1510 = vmatprep.subr.bf16.mxu0 0
  %1511 = vmatpush1.bf16.msra.mxu0 0
  %1512 = vmatprep.subr.bf16.mxu0 0
  %1513 = vmatpush1.bf16.msra.mxu0 0
  %1514 = vmatprep.subr.bf16.mxu0 0
  %1515 = vmatpush1.bf16.msra.mxu0 0
  %1516 = vmatprep.subr.bf16.mxu0 0
  %1517 = vmatpush1.bf16.msra.mxu0 0
  %1518 = vmatprep.subr.bf16.mxu0 0
  %1519 = vmatpush1.bf16.msra.mxu0 0
  %1520 = vmatprep.subr.bf16.mxu0 0
  %1521 = vmatpush1.bf16.msra.mxu0 0
  %1522 = vmatprep.subr.bf16.mxu0 0
  %1523 = vmatpush1.bf16.msra.mxu0 0
  %1524 = vmatprep.subr.bf16.mxu0 0
  %1525 = vmatpush1.bf16.msra.mxu0 0
  %1526 = vmatprep.subr.bf16.mxu0 0
  %1527 = vmatpush1.bf16.msra.mxu0 0
  %1528 = vmatprep.subr.bf16.mxu0 0
  %1529 = vmatpush1.bf16.msra.mxu0 0
  %1530 = vmatprep.mubr.bf16.mxu0 0
  %1531 = vmatmul.mubr.bf16.gmra.mrb[0].mxu0 %v1496
  %v1532 = vpop.f32.mrb[0].mxu0
  %v1533 = vadd.f32 0.0, %v1532
  %v1534 = vpop.f32.mrb[0].mxu0
  %v1535 = vadd.f32 0.0, %v1534
  %v1536 = vpop.f32.mrb[0].mxu0
  %v1537 = vpop.f32.mrb[0].mxu0
  %1538 = vdwg.mxu0
  %1539 = vmatprep.subr.bf16.mxu0 %v1434
  %1540 = vmatpush1.bf16.msra.mxu0 %v1433
  %1541 = vmatprep.subr.bf16.mxu0 %v1442
  %1542 = vmatpush1.bf16.msra.mxu0 %v1441
  %1543 = vmatprep.subr.bf16.mxu0 %v1450
  %1544 = vmatpush1.bf16.msra.mxu0 %v1449
  %1545 = vmatprep.subr.bf16.mxu0 %v1458
  %1546 = vmatpush1.bf16.msra.mxu0 %v1457
  %1547 = vmatprep.subr.bf16.mxu0 0
  %1548 = vmatpush1.bf16.msra.mxu0 0
  %1549 = vmatprep.subr.bf16.mxu0 0
  %1550 = vmatpush1.bf16.msra.mxu0 0
  %1551 = vmatprep.subr.bf16.mxu0 0
  %1552 = vmatpush1.bf16.msra.mxu0 0
  %1553 = vmatprep.subr.bf16.mxu0 0
  %1554 = vmatpush1.bf16.msra.mxu0 0
  %1555 = vmatprep.subr.bf16.mxu0 0
  %1556 = vmatpush1.bf16.msra.mxu0 0
  %1557 = vmatprep.subr.bf16.mxu0 0
  %1558 = vmatpush1.bf16.msra.mxu0 0
  %1559 = vmatprep.subr.bf16.mxu0 0
  %1560 = vmatpush1.bf16.msra.mxu0 0
  %1561 = vmatprep.subr.bf16.mxu0 0
  %1562 = vmatpush1.bf16.msra.mxu0 0
  %1563 = vmatprep.subr.bf16.mxu0 0
  %1564 = vmatpush1.bf16.msra.mxu0 0
  %1565 = vmatprep.subr.bf16.mxu0 0
  %1566 = vmatpush1.bf16.msra.mxu0 0
  %1567 = vmatprep.subr.bf16.mxu0 0
  %1568 = vmatpush1.bf16.msra.mxu0 0
  %1569 = vmatprep.subr.bf16.mxu0 0
  %1570 = vmatpush1.bf16.msra.mxu0 0
  %1571 = vmatprep.mubr.bf16.mxu0 0
  %1572 = vmatmul.mubr.bf16.gmra.mrb[0].mxu0 %v1496
  %v1573 = vpop.f32.mrb[0].mxu0
  %v1574 = vadd.f32 0.0, %v1573
  %v1575 = vpop.f32.mrb[0].mxu0
  %v1576 = vadd.f32 0.0, %v1575
  %v1577 = vpop.f32.mrb[0].mxu0
  %v1578 = vpop.f32.mrb[0].mxu0
  %1579 = vdwg.mxu0
  %1580 = vmatprep.subr.bf16.mxu0 %v1436
  %1581 = vmatpush1.bf16.msra.mxu0 %v1435
  %1582 = vmatprep.subr.bf16.mxu0 %v1444
  %1583 = vmatpush1.bf16.msra.mxu0 %v1443
  %1584 = vmatprep.subr.bf16.mxu0 %v1452
  %1585 = vmatpush1.bf16.msra.mxu0 %v1451
  %1586 = vmatprep.subr.bf16.mxu0 %v1460
  %1587 = vmatpush1.bf16.msra.mxu0 %v1459
  %1588 = vmatprep.subr.bf16.mxu0 0
  %1589 = vmatpush1.bf16.msra.mxu0 0
  %1590 = vmatprep.subr.bf16.mxu0 0
  %1591 = vmatpush1.bf16.msra.mxu0 0
  %1592 = vmatprep.subr.bf16.mxu0 0
  %1593 = vmatpush1.bf16.msra.mxu0 0
  %1594 = vmatprep.subr.bf16.mxu0 0
  %1595 = vmatpush1.bf16.msra.mxu0 0
  %1596 = vmatprep.subr.bf16.mxu0 0
  %1597 = vmatpush1.bf16.msra.mxu0 0
  %1598 = vmatprep.subr.bf16.mxu0 0
  %1599 = vmatpush1.bf16.msra.mxu0 0
  %1600 = vmatprep.subr.bf16.mxu0 0
  %1601 = vmatpush1.bf16.msra.mxu0 0
  %1602 = vmatprep.subr.bf16.mxu0 0
  %1603 = vmatpush1.bf16.msra.mxu0 0
  %1604 = vmatprep.subr.bf16.mxu0 0
  %1605 = vmatpush1.bf16.msra.mxu0 0
  %1606 = vmatprep.subr.bf16.mxu0 0
  %1607 = vmatpush1.bf16.msra.mxu0 0
  %1608 = vmatprep.subr.bf16.mxu0 0
  %1609 = vmatpush1.bf16.msra.mxu0 0
  %1610 = vmatprep.subr.bf16.mxu0 0
  %1611 = vmatpush1.bf16.msra.mxu0 0
  %1612 = vmatprep.mubr.bf16.mxu0 0
  %1613 = vmatmul.mubr.bf16.gmra.mrb[0].mxu0 %v1496
  %v1614 = vpop.f32.mrb[0].mxu0
  %v1615 = vadd.f32 0.0, %v1614
  %v1616 = vpop.f32.mrb[0].mxu0
  %v1617 = vadd.f32 0.0, %v1616
  %v1618 = vpop.f32.mrb[0].mxu0
  %v1619 = vpop.f32.mrb[0].mxu0
  %1620 = vdwg.mxu0
  %1621 = vmatprep.subr.bf16.mxu0 %v1438
  %1622 = vmatpush1.bf16.msra.mxu0 %v1437
  %1623 = vmatprep.subr.bf16.mxu0 %v1446
  %1624 = vmatpush1.bf16.msra.mxu0 %v1445
  %1625 = vmatprep.subr.bf16.mxu0 %v1454
  %1626 = vmatpush1.bf16.msra.mxu0 %v1453
  %1627 = vmatprep.subr.bf16.mxu0 %v1462
  %1628 = vmatpush1.bf16.msra.mxu0 %v1461
  %1629 = vmatprep.subr.bf16.mxu0 0
  %1630 = vmatpush1.bf16.msra.mxu0 0
  %1631 = vmatprep.subr.bf16.mxu0 0
  %1632 = vmatpush1.bf16.msra.mxu0 0
  %1633 = vmatprep.subr.bf16.mxu0 0
  %1634 = vmatpush1.bf16.msra.mxu0 0
  %1635 = vmatprep.subr.bf16.mxu0 0
  %1636 = vmatpush1.bf16.msra.mxu0 0
  %1637 = vmatprep.subr.bf16.mxu0 0
  %1638 = vmatpush1.bf16.msra.mxu0 0
  %1639 = vmatprep.subr.bf16.mxu0 0
  %1640 = vmatpush1.bf16.msra.mxu0 0
  %1641 = vmatprep.subr.bf16.mxu0 0
  %1642 = vmatpush1.bf16.msra.mxu0 0
  %1643 = vmatprep.subr.bf16.mxu0 0
  %1644 = vmatpush1.bf16.msra.mxu0 0
  %1645 = vmatprep.subr.bf16.mxu0 0
  %1646 = vmatpush1.bf16.msra.mxu0 0
  %1647 = vmatprep.subr.bf16.mxu0 0
  %1648 = vmatpush1.bf16.msra.mxu0 0
  %1649 = vmatprep.subr.bf16.mxu0 0
  %1650 = vmatpush1.bf16.msra.mxu0 0
  %1651 = vmatprep.subr.bf16.mxu0 0
  %1652 = vmatpush1.bf16.msra.mxu0 0
  %1653 = vmatprep.mubr.bf16.mxu0 0
  %1654 = vmatmul.mubr.bf16.gmra.mrb[0].mxu0 %v1496
  %v1655 = vpop.f32.mrb[0].mxu0
  %v1656 = vadd.f32 0.0, %v1655
  %v1657 = vpop.f32.mrb[0].mxu0
  %v1658 = vadd.f32 0.0, %v1657
  %v1659 = vpop.f32.mrb[0].mxu0
  %v1660 = vpop.f32.mrb[0].mxu0
  %1661 = vdwg.mxu0
  %v1694 = vunpack.c.l.b16 %v1270
  %v1695 = vunpack.c.h.b16 %v1270
  %v1696 = vunpack.c.l.b16 %v1271
  %v1697 = vunpack.c.h.b16 %v1271
  %v1698 = vunpack.c.l.b16 %v1272
  %v1699 = vunpack.c.h.b16 %v1272
  %v1700 = vunpack.c.l.b16 %v1273
  %v1701 = vunpack.c.h.b16 %v1273
  %v1702 = vunpack.c.l.b16 %v1274
  %v1703 = vunpack.c.h.b16 %v1274
  %v1704 = vunpack.c.l.b16 %v1275
  %v1705 = vunpack.c.h.b16 %v1275
  %v1706 = vunpack.c.l.b16 %v1276
  %v1707 = vunpack.c.h.b16 %v1276
  %v1708 = vunpack.c.l.b16 %v1277
  %v1709 = vunpack.c.h.b16 %v1277
  %v1710 = vunpack.c.l.b16 %v1278
  %v1711 = vunpack.c.h.b16 %v1278
  %v1712 = vunpack.c.l.b16 %v1279
  %v1713 = vunpack.c.h.b16 %v1279
  %v1714 = vunpack.c.l.b16 %v1280
  %v1715 = vunpack.c.h.b16 %v1280
  %v1716 = vunpack.c.l.b16 %v1281
  %v1717 = vunpack.c.h.b16 %v1281
  %v1718 = vunpack.c.l.b16 %v1282
  %v1719 = vunpack.c.h.b16 %v1282
  %v1720 = vunpack.c.l.b16 %v1283
  %v1721 = vunpack.c.h.b16 %v1283
  %v1722 = vunpack.c.l.b16 %v1284
  %v1723 = vunpack.c.h.b16 %v1284
  %v1724 = vunpack.c.l.b16 %v1285
  %v1725 = vunpack.c.h.b16 %v1285
  %v1726 = vunpack.c.l.b16 %v1286
  %v1727 = vunpack.c.h.b16 %v1286
  %v1728 = vunpack.c.l.b16 %v1287
  %v1729 = vunpack.c.h.b16 %v1287
  %v1730 = vunpack.c.l.b16 %v1288
  %v1731 = vunpack.c.h.b16 %v1288
  %v1732 = vunpack.c.l.b16 %v1289
  %v1733 = vunpack.c.h.b16 %v1289
  %v1734 = vunpack.c.l.b16 %v1290
  %v1735 = vunpack.c.h.b16 %v1290
  %v1736 = vunpack.c.l.b16 %v1291
  %v1737 = vunpack.c.h.b16 %v1291
  %v1738 = vunpack.c.l.b16 %v1292
  %v1739 = vunpack.c.h.b16 %v1292
  %v1740 = vunpack.c.l.b16 %v1293
  %v1741 = vunpack.c.h.b16 %v1293
  %v1742 = vunpack.c.l.b16 %v1294
  %v1743 = vunpack.c.h.b16 %v1294
  %v1744 = vunpack.c.l.b16 %v1295
  %v1745 = vunpack.c.h.b16 %v1295
  %v1746 = vunpack.c.l.b16 %v1296
  %v1747 = vunpack.c.h.b16 %v1296
  %v1748 = vunpack.c.l.b16 %v1297
  %v1749 = vunpack.c.h.b16 %v1297
  %v1750 = vunpack.c.l.b16 %v1298
  %v1751 = vunpack.c.h.b16 %v1298
  %v1752 = vunpack.c.l.b16 %v1299
  %v1753 = vunpack.c.h.b16 %v1299
  %v1754 = vunpack.c.l.b16 %v1300
  %v1755 = vunpack.c.h.b16 %v1300
  %v1756 = vunpack.c.l.b16 %v1301
  %v1757 = vunpack.c.h.b16 %v1301
  %v1758 = vpack.c.b16 %v1702, %v1694
  %v1759 = vpack.c.b16 %v1703, %v1695
  %v1760 = vpack.c.b16 %v1704, %v1696
  %v1761 = vpack.c.b16 %v1705, %v1697
  %v1762 = vpack.c.b16 %v1706, %v1698
  %v1763 = vpack.c.b16 %v1707, %v1699
  %v1764 = vpack.c.b16 %v1708, %v1700
  %v1765 = vpack.c.b16 %v1709, %v1701
  %v1766 = vpack.c.b16 %v1718, %v1710
  %v1767 = vpack.c.b16 %v1719, %v1711
  %v1768 = vpack.c.b16 %v1720, %v1712
  %v1769 = vpack.c.b16 %v1721, %v1713
  %v1770 = vpack.c.b16 %v1722, %v1714
  %v1771 = vpack.c.b16 %v1723, %v1715
  %v1772 = vpack.c.b16 %v1724, %v1716
  %v1773 = vpack.c.b16 %v1725, %v1717
  %v1774 = vpack.c.b16 %v1734, %v1726
  %v1775 = vpack.c.b16 %v1735, %v1727
  %v1776 = vpack.c.b16 %v1736, %v1728
  %v1777 = vpack.c.b16 %v1737, %v1729
  %v1778 = vpack.c.b16 %v1738, %v1730
  %v1779 = vpack.c.b16 %v1739, %v1731
  %v1780 = vpack.c.b16 %v1740, %v1732
  %v1781 = vpack.c.b16 %v1741, %v1733
  %v1782 = vpack.c.b16 %v1750, %v1742
  %v1783 = vpack.c.b16 %v1751, %v1743
  %v1784 = vpack.c.b16 %v1752, %v1744
  %v1785 = vpack.c.b16 %v1753, %v1745
  %v1786 = vpack.c.b16 %v1754, %v1746
  %v1787 = vpack.c.b16 %v1755, %v1747
  %v1788 = vpack.c.b16 %v1756, %v1748
  %v1789 = vpack.c.b16 %v1757, %v1749
  %v1823 = vsel %vm611, %v1269, 0
  %1825 = vmatprep.subr.bf16.mxu0 %v1759
  %1826 = vmatpush1.bf16.msra.mxu0 %v1758
  %1827 = vmatprep.subr.bf16.mxu0 %v1767
  %1828 = vmatpush1.bf16.msra.mxu0 %v1766
  %1829 = vmatprep.subr.bf16.mxu0 %v1775
  %1830 = vmatpush1.bf16.msra.mxu0 %v1774
  %1831 = vmatprep.subr.bf16.mxu0 %v1783
  %1832 = vmatpush1.bf16.msra.mxu0 %v1782
  %1833 = vmatprep.subr.bf16.mxu0 0
  %1834 = vmatpush1.bf16.msra.mxu0 0
  %1835 = vmatprep.subr.bf16.mxu0 0
  %1836 = vmatpush1.bf16.msra.mxu0 0
  %1837 = vmatprep.subr.bf16.mxu0 0
  %1838 = vmatpush1.bf16.msra.mxu0 0
  %1839 = vmatprep.subr.bf16.mxu0 0
  %1840 = vmatpush1.bf16.msra.mxu0 0
  %1841 = vmatprep.subr.bf16.mxu0 0
  %1842 = vmatpush1.bf16.msra.mxu0 0
  %1843 = vmatprep.subr.bf16.mxu0 0
  %1844 = vmatpush1.bf16.msra.mxu0 0
  %1845 = vmatprep.subr.bf16.mxu0 0
  %1846 = vmatpush1.bf16.msra.mxu0 0
  %1847 = vmatprep.subr.bf16.mxu0 0
  %1848 = vmatpush1.bf16.msra.mxu0 0
  %1849 = vmatprep.subr.bf16.mxu0 0
  %1850 = vmatpush1.bf16.msra.mxu0 0
  %1851 = vmatprep.subr.bf16.mxu0 0
  %1852 = vmatpush1.bf16.msra.mxu0 0
  %1853 = vmatprep.subr.bf16.mxu0 0
  %1854 = vmatpush1.bf16.msra.mxu0 0
  %1855 = vmatprep.subr.bf16.mxu0 0
  %1856 = vmatpush1.bf16.msra.mxu0 0
  %1857 = vmatprep.mubr.bf16.mxu0 0
  %1858 = vmatmul.mubr.bf16.gmra.mrb[0].mxu0 %v1823
  %v1859 = vpop.f32.mrb[0].mxu0
  %v1860 = vadd.f32 %v1533, %v1859
  %v1861 = vpop.f32.mrb[0].mxu0
  %v1862 = vadd.f32 %v1535, %v1861
  %v1863 = vpop.f32.mrb[0].mxu0
  %v1864 = vpop.f32.mrb[0].mxu0
  %1865 = vdwg.mxu0
  %1866 = vmatprep.subr.bf16.mxu0 %v1761
  %1867 = vmatpush1.bf16.msra.mxu0 %v1760
  %1868 = vmatprep.subr.bf16.mxu0 %v1769
  %1869 = vmatpush1.bf16.msra.mxu0 %v1768
  %1870 = vmatprep.subr.bf16.mxu0 %v1777
  %1871 = vmatpush1.bf16.msra.mxu0 %v1776
  %1872 = vmatprep.subr.bf16.mxu0 %v1785
  %1873 = vmatpush1.bf16.msra.mxu0 %v1784
  %1874 = vmatprep.subr.bf16.mxu0 0
  %1875 = vmatpush1.bf16.msra.mxu0 0
  %1876 = vmatprep.subr.bf16.mxu0 0
  %1877 = vmatpush1.bf16.msra.mxu0 0
  %1878 = vmatprep.subr.bf16.mxu0 0
  %1879 = vmatpush1.bf16.msra.mxu0 0
  %1880 = vmatprep.subr.bf16.mxu0 0
  %1881 = vmatpush1.bf16.msra.mxu0 0
  %1882 = vmatprep.subr.bf16.mxu0 0
  %1883 = vmatpush1.bf16.msra.mxu0 0
  %1884 = vmatprep.subr.bf16.mxu0 0
  %1885 = vmatpush1.bf16.msra.mxu0 0
  %1886 = vmatprep.subr.bf16.mxu0 0
  %1887 = vmatpush1.bf16.msra.mxu0 0
  %1888 = vmatprep.subr.bf16.mxu0 0
  %1889 = vmatpush1.bf16.msra.mxu0 0
  %1890 = vmatprep.subr.bf16.mxu0 0
  %1891 = vmatpush1.bf16.msra.mxu0 0
  %1892 = vmatprep.subr.bf16.mxu0 0
  %1893 = vmatpush1.bf16.msra.mxu0 0
  %1894 = vmatprep.subr.bf16.mxu0 0
  %1895 = vmatpush1.bf16.msra.mxu0 0
  %1896 = vmatprep.subr.bf16.mxu0 0
  %1897 = vmatpush1.bf16.msra.mxu0 0
  %1898 = vmatprep.mubr.bf16.mxu0 0
  %1899 = vmatmul.mubr.bf16.gmra.mrb[0].mxu0 %v1823
  %v1900 = vpop.f32.mrb[0].mxu0
  %v1901 = vadd.f32 %v1574, %v1900
  %v1902 = vpop.f32.mrb[0].mxu0
  %v1903 = vadd.f32 %v1576, %v1902
  %v1904 = vpop.f32.mrb[0].mxu0
  %v1905 = vpop.f32.mrb[0].mxu0
  %1906 = vdwg.mxu0
  %1907 = vmatprep.subr.bf16.mxu0 %v1763
  %1908 = vmatpush1.bf16.msra.mxu0 %v1762
  %1909 = vmatprep.subr.bf16.mxu0 %v1771
  %1910 = vmatpush1.bf16.msra.mxu0 %v1770
  %1911 = vmatprep.subr.bf16.mxu0 %v1779
  %1912 = vmatpush1.bf16.msra.mxu0 %v1778
  %1913 = vmatprep.subr.bf16.mxu0 %v1787
  %1914 = vmatpush1.bf16.msra.mxu0 %v1786
  %1915 = vmatprep.subr.bf16.mxu0 0
  %1916 = vmatpush1.bf16.msra.mxu0 0
  %1917 = vmatprep.subr.bf16.mxu0 0
  %1918 = vmatpush1.bf16.msra.mxu0 0
  %1919 = vmatprep.subr.bf16.mxu0 0
  %1920 = vmatpush1.bf16.msra.mxu0 0
  %1921 = vmatprep.subr.bf16.mxu0 0
  %1922 = vmatpush1.bf16.msra.mxu0 0
  %1923 = vmatprep.subr.bf16.mxu0 0
  %1924 = vmatpush1.bf16.msra.mxu0 0
  %1925 = vmatprep.subr.bf16.mxu0 0
  %1926 = vmatpush1.bf16.msra.mxu0 0
  %1927 = vmatprep.subr.bf16.mxu0 0
  %1928 = vmatpush1.bf16.msra.mxu0 0
  %1929 = vmatprep.subr.bf16.mxu0 0
  %1930 = vmatpush1.bf16.msra.mxu0 0
  %1931 = vmatprep.subr.bf16.mxu0 0
  %1932 = vmatpush1.bf16.msra.mxu0 0
  %1933 = vmatprep.subr.bf16.mxu0 0
  %1934 = vmatpush1.bf16.msra.mxu0 0
  %1935 = vmatprep.subr.bf16.mxu0 0
  %1936 = vmatpush1.bf16.msra.mxu0 0
  %1937 = vmatprep.subr.bf16.mxu0 0
  %1938 = vmatpush1.bf16.msra.mxu0 0
  %1939 = vmatprep.mubr.bf16.mxu0 0
  %1940 = vmatmul.mubr.bf16.gmra.mrb[0].mxu0 %v1823
  %v1941 = vpop.f32.mrb[0].mxu0
  %v1942 = vadd.f32 %v1615, %v1941
  %v1943 = vpop.f32.mrb[0].mxu0
  %v1944 = vadd.f32 %v1617, %v1943
  %v1945 = vpop.f32.mrb[0].mxu0
  %v1946 = vpop.f32.mrb[0].mxu0
  %1947 = vdwg.mxu0
  %1948 = vmatprep.subr.bf16.mxu0 %v1765
  %1949 = vmatpush1.bf16.msra.mxu0 %v1764
  %1950 = vmatprep.subr.bf16.mxu0 %v1773
  %1951 = vmatpush1.bf16.msra.mxu0 %v1772
  %1952 = vmatprep.subr.bf16.mxu0 %v1781
  %1953 = vmatpush1.bf16.msra.mxu0 %v1780
  %1954 = vmatprep.subr.bf16.mxu0 %v1789
  %1955 = vmatpush1.bf16.msra.mxu0 %v1788
  %1956 = vmatprep.subr.bf16.mxu0 0
  %1957 = vmatpush1.bf16.msra.mxu0 0
  %1958 = vmatprep.subr.bf16.mxu0 0
  %1959 = vmatpush1.bf16.msra.mxu0 0
  %1960 = vmatprep.subr.bf16.mxu0 0
  %1961 = vmatpush1.bf16.msra.mxu0 0
  %1962 = vmatprep.subr.bf16.mxu0 0
  %1963 = vmatpush1.bf16.msra.mxu0 0
  %1964 = vmatprep.subr.bf16.mxu0 0
  %1965 = vmatpush1.bf16.msra.mxu0 0
  %1966 = vmatprep.subr.bf16.mxu0 0
  %1967 = vmatpush1.bf16.msra.mxu0 0
  %1968 = vmatprep.subr.bf16.mxu0 0
  %1969 = vmatpush1.bf16.msra.mxu0 0
  %1970 = vmatprep.subr.bf16.mxu0 0
  %1971 = vmatpush1.bf16.msra.mxu0 0
  %1972 = vmatprep.subr.bf16.mxu0 0
  %1973 = vmatpush1.bf16.msra.mxu0 0
  %1974 = vmatprep.subr.bf16.mxu0 0
  %1975 = vmatpush1.bf16.msra.mxu0 0
  %1976 = vmatprep.subr.bf16.mxu0 0
  %1977 = vmatpush1.bf16.msra.mxu0 0
  %1978 = vmatprep.subr.bf16.mxu0 0
  %1979 = vmatpush1.bf16.msra.mxu0 0
  %1980 = vmatprep.mubr.bf16.mxu0 0
  %1981 = vmatmul.mubr.bf16.gmra.mrb[0].mxu0 %v1823
  %v1982 = vpop.f32.mrb[0].mxu0
  %v1983 = vadd.f32 %v1656, %v1982
  %v1984 = vpop.f32.mrb[0].mxu0
  %v1985 = vadd.f32 %v1658, %v1984
  %v1986 = vpop.f32.mrb[0].mxu0
  %v1987 = vpop.f32.mrb[0].mxu0
  %1988 = vdwg.mxu0
  %v1989 = vld [vmem:[%s7] sm:$0xff]
  %v1991 = vlaneseq
  %v1992 = vshrl.u32 %v1991, 7
  %v1993 = vsub.s32 0, %v1992
  %v1994 = vrot.slane %v1989, %v1993
  %v1995 = vlaneseq
  %v1996 = vshrl.u32 %v1995, 7
  %v1997 = vsub.s32 1, %v1996
  %v1998 = vrot.slane %v1989, %v1997
  %v1999 = vlaneseq
  %v2000 = vshrl.u32 %v1999, 7
  %v2001 = vsub.s32 2, %v2000
  %v2002 = vrot.slane %v1989, %v2001
  %v2003 = vlaneseq
  %v2004 = vshrl.u32 %v2003, 7
  %v2005 = vsub.s32 3, %v2004
  %v2006 = vrot.slane %v1989, %v2005
  %v2007 = vlaneseq
  %v2008 = vshrl.u32 %v2007, 7
  %v2009 = vsub.s32 4, %v2008
  %v2010 = vrot.slane %v1989, %v2009
  %v2011 = vlaneseq
  %v2012 = vshrl.u32 %v2011, 7
  %v2013 = vsub.s32 5, %v2012
  %v2014 = vrot.slane %v1989, %v2013
  %v2015 = vlaneseq
  %v2016 = vshrl.u32 %v2015, 7
  %v2017 = vsub.s32 6, %v2016
  %v2018 = vrot.slane %v1989, %v2017
  %v2019 = vlaneseq
  %v2020 = vshrl.u32 %v2019, 7
  %v2021 = vsub.s32 7, %v2020
  %v2022 = vrot.slane %v1989, %v2021
  %v2031 = vadd.f32 %v1860, %v1994
  %v2032 = vadd.f32 %v1862, %v1998
  %v2033 = vadd.f32 %v1901, %v2002
  %v2034 = vadd.f32 %v1903, %v2006
  %v2035 = vadd.f32 %v1942, %v2010
  %v2036 = vadd.f32 %v1944, %v2014
  %v2037 = vadd.f32 %v1983, %v2018
  %v2038 = vadd.f32 %v1985, %v2022
  %v2039 = vmax.f32 %v2031, 0.0
  %v2040 = vmax.f32 %v2032, 0.0
  %v2041 = vmax.f32 %v2033, 0.0
  %v2042 = vmax.f32 %v2034, 0.0
  %v2043 = vmax.f32 %v2035, 0.0
  %v2044 = vmax.f32 %v2036, 0.0
  %v2045 = vmax.f32 %v2037, 0.0
  %v2046 = vmax.f32 %v2038, 0.0
  %v2047 = vpack.c.bf16 %v2039, %v2039
  %v2048 = vpack.c.bf16 %v2040, %v2040
  %v2049 = vpack.c.bf16 %v2041, %v2041
  %v2050 = vpack.c.bf16 %v2042, %v2042
  %v2051 = vpack.c.bf16 %v2043, %v2043
  %v2052 = vpack.c.bf16 %v2044, %v2044
  %v2053 = vpack.c.bf16 %v2045, %v2045
  %v2054 = vpack.c.bf16 %v2046, %v2046
  %v2055 = vld [vmem:[%s8] sm:$0xf]
  %v2056 = vld [vmem:[%s8 + $0x4] sm:$0xf]
  %v2057 = vld [vmem:[%s8 + $0x8] sm:$0xf]
  %v2058 = vld [vmem:[%s8 + $0xc] sm:$0xf]
  %v2059 = vld [vmem:[%s8 + $0x10] sm:$0xf]
  %v2060 = vld [vmem:[%s8 + $0x14] sm:$0xf]
  %v2061 = vld [vmem:[%s8 + $0x18] sm:$0xf]
  %v2062 = vld [vmem:[%s8 + $0x1c] sm:$0xf]
  %v2063 = vld [vmem:[%s8 + $0x20] sm:$0xf]
  %v2064 = vld [vmem:[%s8 + $0x24] sm:$0xf]
  %v2065 = vld [vmem:[%s8 + $0x28] sm:$0xf]
  %v2066 = vld [vmem:[%s8 + $0x2c] sm:$0xf]
  %v2067 = vld [vmem:[%s8 + $0x30] sm:$0xf]
  %v2068 = vld [vmem:[%s8 + $0x34] sm:$0xf]
  %v2069 = vld [vmem:[%s8 + $0x38] sm:$0xf]
  %v2070 = vld [vmem:[%s8 + $0x3c] sm:$0xf]
  %v2071 = vld [vmem:[%s8 + $0x40] sm:$0xf]
  %v2072 = vld [vmem:[%s8 + $0x44] sm:$0xf]
  %v2073 = vld [vmem:[%s8 + $0x48] sm:$0xf]
  %v2074 = vld [vmem:[%s8 + $0x4c] sm:$0xf]
  %v2075 = vld [vmem:[%s8 + $0x50] sm:$0xf]
  %v2076 = vld [vmem:[%s8 + $0x54] sm:$0xf]
  %v2077 = vld [vmem:[%s8 + $0x58] sm:$0xf]
  %v2078 = vld [vmem:[%s8 + $0x5c] sm:$0xf]
  %v2079 = vld [vmem:[%s8 + $0x60] sm:$0xf]
  %v2080 = vld [vmem:[%s8 + $0x64] sm:$0xf]
  %v2081 = vld [vmem:[%s8 + $0x68] sm:$0xf]
  %v2082 = vld [vmem:[%s8 + $0x6c] sm:$0xf]
  %v2083 = vld [vmem:[%s8 + $0x70] sm:$0xf]
  %v2084 = vld [vmem:[%s8 + $0x74] sm:$0xf]
  %v2085 = vld [vmem:[%s8 + $0x78] sm:$0xf]
  %v2086 = vld [vmem:[%s8 + $0x7c] sm:$0xf]
  %v2087 = vld [vmem:[%s8 + $0x80] sm:$0xf]
  %v2088 = vld [vmem:[%s8 + $0x84] sm:$0xf]
  %v2089 = vld [vmem:[%s8 + $0x88] sm:$0xf]
  %v2090 = vld [vmem:[%s8 + $0x8c] sm:$0xf]
  %v2091 = vld [vmem:[%s8 + $0x90] sm:$0xf]
  %v2092 = vld [vmem:[%s8 + $0x94] sm:$0xf]
  %v2093 = vld [vmem:[%s8 + $0x98] sm:$0xf]
  %v2094 = vld [vmem:[%s8 + $0x9c] sm:$0xf]
  %v2095 = vld [vmem:[%s8 + $0xa0] sm:$0xf]
  %v2096 = vld [vmem:[%s8 + $0xa4] sm:$0xf]
  %v2097 = vld [vmem:[%s8 + $0xa8] sm:$0xf]
  %v2098 = vld [vmem:[%s8 + $0xac] sm:$0xf]
  %v2099 = vld [vmem:[%s8 + $0xb0] sm:$0xf]
  %v2100 = vld [vmem:[%s8 + $0xb4] sm:$0xf]
  %v2101 = vld [vmem:[%s8 + $0xb8] sm:$0xf]
  %v2102 = vld [vmem:[%s8 + $0xbc] sm:$0xf]
  %v2103 = vld [vmem:[%s8 + $0xc0] sm:$0xf]
  %v2104 = vld [vmem:[%s8 + $0xc4] sm:$0xf]
  %v2105 = vld [vmem:[%s8 + $0xc8] sm:$0xf]
  %v2106 = vld [vmem:[%s8 + $0xcc] sm:$0xf]
  %v2107 = vld [vmem:[%s8 + $0xd0] sm:$0xf]
  %v2108 = vld [vmem:[%s8 + $0xd4] sm:$0xf]
  %v2109 = vld [vmem:[%s8 + $0xd8] sm:$0xf]
  %v2110 = vld [vmem:[%s8 + $0xdc] sm:$0xf]
  %v2111 = vld [vmem:[%s8 + $0xe0] sm:$0xf]
  %v2112 = vld [vmem:[%s8 + $0xe4] sm:$0xf]
  %v2113 = vld [vmem:[%s8 + $0xe8] sm:$0xf]
  %v2114 = vld [vmem:[%s8 + $0xec] sm:$0xf]
  %v2115 = vld [vmem:[%s8 + $0xf0] sm:$0xf]
  %v2116 = vld [vmem:[%s8 + $0xf4] sm:$0xf]
  %v2117 = vld [vmem:[%s8 + $0xf8] sm:$0xf]
  %v2118 = vld [vmem:[%s8 + $0xfc] sm:$0xf]
  %v2119 = vld [vmem:[%s8 + $0x100] sm:$0xf]
  %v2120 = vld [vmem:[%s8 + $0x104] sm:$0xf]
  %v2121 = vld [vmem:[%s8 + $0x108] sm:$0xf]
  %v2122 = vld [vmem:[%s8 + $0x10c] sm:$0xf]
  %v2123 = vld [vmem:[%s8 + $0x110] sm:$0xf]
  %v2124 = vld [vmem:[%s8 + $0x114] sm:$0xf]
  %v2125 = vld [vmem:[%s8 + $0x118] sm:$0xf]
  %v2126 = vld [vmem:[%s8 + $0x11c] sm:$0xf]
  %v2127 = vld [vmem:[%s8 + $0x120] sm:$0xf]
  %v2128 = vld [vmem:[%s8 + $0x124] sm:$0xf]
  %v2129 = vld [vmem:[%s8 + $0x128] sm:$0xf]
  %v2130 = vld [vmem:[%s8 + $0x12c] sm:$0xf]
  %v2131 = vld [vmem:[%s8 + $0x130] sm:$0xf]
  %v2132 = vld [vmem:[%s8 + $0x134] sm:$0xf]
  %v2133 = vld [vmem:[%s8 + $0x138] sm:$0xf]
  %v2134 = vld [vmem:[%s8 + $0x13c] sm:$0xf]
  %v2135 = vld [vmem:[%s8 + $0x140] sm:$0xf]
  %v2136 = vld [vmem:[%s8 + $0x144] sm:$0xf]
  %v2137 = vld [vmem:[%s8 + $0x148] sm:$0xf]
  %v2138 = vld [vmem:[%s8 + $0x14c] sm:$0xf]
  %v2139 = vld [vmem:[%s8 + $0x150] sm:$0xf]
  %v2140 = vld [vmem:[%s8 + $0x154] sm:$0xf]
  %v2141 = vld [vmem:[%s8 + $0x158] sm:$0xf]
  %v2142 = vld [vmem:[%s8 + $0x15c] sm:$0xf]
  %v2143 = vld [vmem:[%s8 + $0x160] sm:$0xf]
  %v2144 = vld [vmem:[%s8 + $0x164] sm:$0xf]
  %v2145 = vld [vmem:[%s8 + $0x168] sm:$0xf]
  %v2146 = vld [vmem:[%s8 + $0x16c] sm:$0xf]
  %v2147 = vld [vmem:[%s8 + $0x170] sm:$0xf]
  %v2148 = vld [vmem:[%s8 + $0x174] sm:$0xf]
  %v2149 = vld [vmem:[%s8 + $0x178] sm:$0xf]
  %v2150 = vld [vmem:[%s8 + $0x17c] sm:$0xf]
  %v2151 = vld [vmem:[%s8 + $0x180] sm:$0xf]
  %v2152 = vld [vmem:[%s8 + $0x184] sm:$0xf]
  %v2153 = vld [vmem:[%s8 + $0x188] sm:$0xf]
  %v2154 = vld [vmem:[%s8 + $0x18c] sm:$0xf]
  %v2155 = vld [vmem:[%s8 + $0x190] sm:$0xf]
  %v2156 = vld [vmem:[%s8 + $0x194] sm:$0xf]
  %v2157 = vld [vmem:[%s8 + $0x198] sm:$0xf]
  %v2158 = vld [vmem:[%s8 + $0x19c] sm:$0xf]
  %v2159 = vld [vmem:[%s8 + $0x1a0] sm:$0xf]
  %v2160 = vld [vmem:[%s8 + $0x1a4] sm:$0xf]
  %v2161 = vld [vmem:[%s8 + $0x1a8] sm:$0xf]
  %v2162 = vld [vmem:[%s8 + $0x1ac] sm:$0xf]
  %v2163 = vld [vmem:[%s8 + $0x1b0] sm:$0xf]
  %v2164 = vld [vmem:[%s8 + $0x1b4] sm:$0xf]
  %v2165 = vld [vmem:[%s8 + $0x1b8] sm:$0xf]
  %v2166 = vld [vmem:[%s8 + $0x1bc] sm:$0xf]
  %v2167 = vld [vmem:[%s8 + $0x1c0] sm:$0xf]
  %v2168 = vld [vmem:[%s8 + $0x1c4] sm:$0xf]
  %v2169 = vld [vmem:[%s8 + $0x1c8] sm:$0xf]
  %v2170 = vld [vmem:[%s8 + $0x1cc] sm:$0xf]
  %v2171 = vld [vmem:[%s8 + $0x1d0] sm:$0xf]
  %v2172 = vld [vmem:[%s8 + $0x1d4] sm:$0xf]
  %v2173 = vld [vmem:[%s8 + $0x1d8] sm:$0xf]
  %v2174 = vld [vmem:[%s8 + $0x1dc] sm:$0xf]
  %v2175 = vld [vmem:[%s8 + $0x1e0] sm:$0xf]
  %v2176 = vld [vmem:[%s8 + $0x1e4] sm:$0xf]
  %v2177 = vld [vmem:[%s8 + $0x1e8] sm:$0xf]
  %v2178 = vld [vmem:[%s8 + $0x1ec] sm:$0xf]
  %v2179 = vld [vmem:[%s8 + $0x1f0] sm:$0xf]
  %v2180 = vld [vmem:[%s8 + $0x1f4] sm:$0xf]
  %v2181 = vld [vmem:[%s8 + $0x1f8] sm:$0xf]
  %v2182 = vld [vmem:[%s8 + $0x1fc] sm:$0xf]
  %v2183 = vld [vmem:[%s9] sm:$0x1]
  %v2185 = vlaneseq
  %v2186 = vshrl.u32 %v2185, 7
  %v2187 = vsub.s32 0, %v2186
  %v2188 = vrot.slane %v2183, %v2187
  %v2318 = vunpack.c.l.b16 %v2055
  %v2319 = vunpack.c.l.b16 %v2056
  %v2320 = vunpack.c.l.b16 %v2057
  %v2321 = vunpack.c.l.b16 %v2058
  %v2322 = vunpack.c.l.b16 %v2059
  %v2323 = vunpack.c.l.b16 %v2060
  %v2324 = vunpack.c.l.b16 %v2061
  %v2325 = vunpack.c.l.b16 %v2062
  %v2326 = vunpack.c.l.b16 %v2063
  %v2327 = vunpack.c.l.b16 %v2064
  %v2328 = vunpack.c.l.b16 %v2065
  %v2329 = vunpack.c.l.b16 %v2066
  %v2330 = vunpack.c.l.b16 %v2067
  %v2331 = vunpack.c.l.b16 %v2068
  %v2332 = vunpack.c.l.b16 %v2069
  %v2333 = vunpack.c.l.b16 %v2070
  %v2334 = vunpack.c.l.b16 %v2071
  %v2335 = vunpack.c.l.b16 %v2072
  %v2336 = vunpack.c.l.b16 %v2073
  %v2337 = vunpack.c.l.b16 %v2074
  %v2338 = vunpack.c.l.b16 %v2075
  %v2339 = vunpack.c.l.b16 %v2076
  %v2340 = vunpack.c.l.b16 %v2077
  %v2341 = vunpack.c.l.b16 %v2078
  %v2342 = vunpack.c.l.b16 %v2079
  %v2343 = vunpack.c.l.b16 %v2080
  %v2344 = vunpack.c.l.b16 %v2081
  %v2345 = vunpack.c.l.b16 %v2082
  %v2346 = vunpack.c.l.b16 %v2083
  %v2347 = vunpack.c.l.b16 %v2084
  %v2348 = vunpack.c.l.b16 %v2085
  %v2349 = vunpack.c.l.b16 %v2086
  %v2350 = vunpack.c.l.b16 %v2087
  %v2351 = vunpack.c.l.b16 %v2088
  %v2352 = vunpack.c.l.b16 %v2089
  %v2353 = vunpack.c.l.b16 %v2090
  %v2354 = vunpack.c.l.b16 %v2091
  %v2355 = vunpack.c.l.b16 %v2092
  %v2356 = vunpack.c.l.b16 %v2093
  %v2357 = vunpack.c.l.b16 %v2094
  %v2358 = vunpack.c.l.b16 %v2095
  %v2359 = vunpack.c.l.b16 %v2096
  %v2360 = vunpack.c.l.b16 %v2097
  %v2361 = vunpack.c.l.b16 %v2098
  %v2362 = vunpack.c.l.b16 %v2099
  %v2363 = vunpack.c.l.b16 %v2100
  %v2364 = vunpack.c.l.b16 %v2101
  %v2365 = vunpack.c.l.b16 %v2102
  %v2366 = vunpack.c.l.b16 %v2103
  %v2367 = vunpack.c.l.b16 %v2104
  %v2368 = vunpack.c.l.b16 %v2105
  %v2369 = vunpack.c.l.b16 %v2106
  %v2370 = vunpack.c.l.b16 %v2107
  %v2371 = vunpack.c.l.b16 %v2108
  %v2372 = vunpack.c.l.b16 %v2109
  %v2373 = vunpack.c.l.b16 %v2110
  %v2374 = vunpack.c.l.b16 %v2111
  %v2375 = vunpack.c.l.b16 %v2112
  %v2376 = vunpack.c.l.b16 %v2113
  %v2377 = vunpack.c.l.b16 %v2114
  %v2378 = vunpack.c.l.b16 %v2115
  %v2379 = vunpack.c.l.b16 %v2116
  %v2380 = vunpack.c.l.b16 %v2117
  %v2381 = vunpack.c.l.b16 %v2118
  %v2382 = vunpack.c.l.b16 %v2119
  %v2383 = vunpack.c.l.b16 %v2120
  %v2384 = vunpack.c.l.b16 %v2121
  %v2385 = vunpack.c.l.b16 %v2122
  %v2386 = vunpack.c.l.b16 %v2123
  %v2387 = vunpack.c.l.b16 %v2124
  %v2388 = vunpack.c.l.b16 %v2125
  %v2389 = vunpack.c.l.b16 %v2126
  %v2390 = vunpack.c.l.b16 %v2127
  %v2391 = vunpack.c.l.b16 %v2128
  %v2392 = vunpack.c.l.b16 %v2129
  %v2393 = vunpack.c.l.b16 %v2130
  %v2394 = vunpack.c.l.b16 %v2131
  %v2395 = vunpack.c.l.b16 %v2132
  %v2396 = vunpack.c.l.b16 %v2133
  %v2397 = vunpack.c.l.b16 %v2134
  %v2398 = vunpack.c.l.b16 %v2135
  %v2399 = vunpack.c.l.b16 %v2136
  %v2400 = vunpack.c.l.b16 %v2137
  %v2401 = vunpack.c.l.b16 %v2138
  %v2402 = vunpack.c.l.b16 %v2139
  %v2403 = vunpack.c.l.b16 %v2140
  %v2404 = vunpack.c.l.b16 %v2141
  %v2405 = vunpack.c.l.b16 %v2142
  %v2406 = vunpack.c.l.b16 %v2143
  %v2407 = vunpack.c.l.b16 %v2144
  %v2408 = vunpack.c.l.b16 %v2145
  %v2409 = vunpack.c.l.b16 %v2146
  %v2410 = vunpack.c.l.b16 %v2147
  %v2411 = vunpack.c.l.b16 %v2148
  %v2412 = vunpack.c.l.b16 %v2149
  %v2413 = vunpack.c.l.b16 %v2150
  %v2414 = vunpack.c.l.b16 %v2151
  %v2415 = vunpack.c.l.b16 %v2152
  %v2416 = vunpack.c.l.b16 %v2153
  %v2417 = vunpack.c.l.b16 %v2154
  %v2418 = vunpack.c.l.b16 %v2155
  %v2419 = vunpack.c.l.b16 %v2156
  %v2420 = vunpack.c.l.b16 %v2157
  %v2421 = vunpack.c.l.b16 %v2158
  %v2422 = vunpack.c.l.b16 %v2159
  %v2423 = vunpack.c.l.b16 %v2160
  %v2424 = vunpack.c.l.b16 %v2161
  %v2425 = vunpack.c.l.b16 %v2162
  %v2426 = vunpack.c.l.b16 %v2163
  %v2427 = vunpack.c.l.b16 %v2164
  %v2428 = vunpack.c.l.b16 %v2165
  %v2429 = vunpack.c.l.b16 %v2166
  %v2430 = vunpack.c.l.b16 %v2167
  %v2431 = vunpack.c.l.b16 %v2168
  %v2432 = vunpack.c.l.b16 %v2169
  %v2433 = vunpack.c.l.b16 %v2170
  %v2434 = vunpack.c.l.b16 %v2171
  %v2435 = vunpack.c.l.b16 %v2172
  %v2436 = vunpack.c.l.b16 %v2173
  %v2437 = vunpack.c.l.b16 %v2174
  %v2438 = vunpack.c.l.b16 %v2175
  %v2439 = vunpack.c.l.b16 %v2176
  %v2440 = vunpack.c.l.b16 %v2177
  %v2441 = vunpack.c.l.b16 %v2178
  %v2442 = vunpack.c.l.b16 %v2179
  %v2443 = vunpack.c.l.b16 %v2180
  %v2444 = vunpack.c.l.b16 %v2181
  %v2445 = vunpack.c.l.b16 %v2182
  %v2446 = vpack.c.b16 %v2319, %v2318
  %v2447 = vpack.c.b16 %v2321, %v2320
  %v2448 = vpack.c.b16 %v2323, %v2322
  %v2449 = vpack.c.b16 %v2325, %v2324
  %v2450 = vpack.c.b16 %v2327, %v2326
  %v2451 = vpack.c.b16 %v2329, %v2328
  %v2452 = vpack.c.b16 %v2331, %v2330
  %v2453 = vpack.c.b16 %v2333, %v2332
  %v2454 = vpack.c.b16 %v2335, %v2334
  %v2455 = vpack.c.b16 %v2337, %v2336
  %v2456 = vpack.c.b16 %v2339, %v2338
  %v2457 = vpack.c.b16 %v2341, %v2340
  %v2458 = vpack.c.b16 %v2343, %v2342
  %v2459 = vpack.c.b16 %v2345, %v2344
  %v2460 = vpack.c.b16 %v2347, %v2346
  %v2461 = vpack.c.b16 %v2349, %v2348
  %v2462 = vpack.c.b16 %v2351, %v2350
  %v2463 = vpack.c.b16 %v2353, %v2352
  %v2464 = vpack.c.b16 %v2355, %v2354
  %v2465 = vpack.c.b16 %v2357, %v2356
  %v2466 = vpack.c.b16 %v2359, %v2358
  %v2467 = vpack.c.b16 %v2361, %v2360
  %v2468 = vpack.c.b16 %v2363, %v2362
  %v2469 = vpack.c.b16 %v2365, %v2364
  %v2470 = vpack.c.b16 %v2367, %v2366
  %v2471 = vpack.c.b16 %v2369, %v2368
  %v2472 = vpack.c.b16 %v2371, %v2370
  %v2473 = vpack.c.b16 %v2373, %v2372
  %v2474 = vpack.c.b16 %v2375, %v2374
  %v2475 = vpack.c.b16 %v2377, %v2376
  %v2476 = vpack.c.b16 %v2379, %v2378
  %v2477 = vpack.c.b16 %v2381, %v2380
  %v2478 = vpack.c.b16 %v2383, %v2382
  %v2479 = vpack.c.b16 %v2385, %v2384
  %v2480 = vpack.c.b16 %v2387, %v2386
  %v2481 = vpack.c.b16 %v2389, %v2388
  %v2482 = vpack.c.b16 %v2391, %v2390
  %v2483 = vpack.c.b16 %v2393, %v2392
  %v2484 = vpack.c.b16 %v2395, %v2394
  %v2485 = vpack.c.b16 %v2397, %v2396
  %v2486 = vpack.c.b16 %v2399, %v2398
  %v2487 = vpack.c.b16 %v2401, %v2400
  %v2488 = vpack.c.b16 %v2403, %v2402
  %v2489 = vpack.c.b16 %v2405, %v2404
  %v2490 = vpack.c.b16 %v2407, %v2406
  %v2491 = vpack.c.b16 %v2409, %v2408
  %v2492 = vpack.c.b16 %v2411, %v2410
  %v2493 = vpack.c.b16 %v2413, %v2412
  %v2494 = vpack.c.b16 %v2415, %v2414
  %v2495 = vpack.c.b16 %v2417, %v2416
  %v2496 = vpack.c.b16 %v2419, %v2418
  %v2497 = vpack.c.b16 %v2421, %v2420
  %v2498 = vpack.c.b16 %v2423, %v2422
  %v2499 = vpack.c.b16 %v2425, %v2424
  %v2500 = vpack.c.b16 %v2427, %v2426
  %v2501 = vpack.c.b16 %v2429, %v2428
  %v2502 = vpack.c.b16 %v2431, %v2430
  %v2503 = vpack.c.b16 %v2433, %v2432
  %v2504 = vpack.c.b16 %v2435, %v2434
  %v2505 = vpack.c.b16 %v2437, %v2436
  %v2506 = vpack.c.b16 %v2439, %v2438
  %v2507 = vpack.c.b16 %v2441, %v2440
  %v2508 = vpack.c.b16 %v2443, %v2442
  %v2509 = vpack.c.b16 %v2445, %v2444
  %2574 = vmatprep.subr.bf16.mxu0 0
  %2575 = vmatpush1.bf16.msra.mxu0 %v2446
  %2576 = vmatprep.subr.bf16.mxu0 0
  %2577 = vmatpush1.bf16.msra.mxu0 %v2447
  %2578 = vmatprep.subr.bf16.mxu0 0
  %2579 = vmatpush1.bf16.msra.mxu0 %v2448
  %2580 = vmatprep.subr.bf16.mxu0 0
  %2581 = vmatpush1.bf16.msra.mxu0 %v2449
  %2582 = vmatprep.subr.bf16.mxu0 0
  %2583 = vmatpush1.bf16.msra.mxu0 %v2450
  %2584 = vmatprep.subr.bf16.mxu0 0
  %2585 = vmatpush1.bf16.msra.mxu0 %v2451
  %2586 = vmatprep.subr.bf16.mxu0 0
  %2587 = vmatpush1.bf16.msra.mxu0 %v2452
  %2588 = vmatprep.subr.bf16.mxu0 0
  %2589 = vmatpush1.bf16.msra.mxu0 %v2453
  %2590 = vmatprep.subr.bf16.mxu0 0
  %2591 = vmatpush1.bf16.msra.mxu0 %v2454
  %2592 = vmatprep.subr.bf16.mxu0 0
  %2593 = vmatpush1.bf16.msra.mxu0 %v2455
  %2594 = vmatprep.subr.bf16.mxu0 0
  %2595 = vmatpush1.bf16.msra.mxu0 %v2456
  %2596 = vmatprep.subr.bf16.mxu0 0
  %2597 = vmatpush1.bf16.msra.mxu0 %v2457
  %2598 = vmatprep.subr.bf16.mxu0 0
  %2599 = vmatpush1.bf16.msra.mxu0 %v2458
  %2600 = vmatprep.subr.bf16.mxu0 0
  %2601 = vmatpush1.bf16.msra.mxu0 %v2459
  %2602 = vmatprep.subr.bf16.mxu0 0
  %2603 = vmatpush1.bf16.msra.mxu0 %v2460
  %2604 = vmatprep.subr.bf16.mxu0 0
  %2605 = vmatpush1.bf16.msra.mxu0 %v2461
  %2606 = vmatprep.mubr.bf16.mxu0 %v2048
  %2607 = vmatmul.mubr.bf16.gmra.mrb[0].mxu0 %v2047
  %v2608 = vpop.f32.mrb[0].mxu0
  %v2609 = vadd.f32 %v2188, %v2608
  %v2610 = vpop.f32.mrb[0].mxu0
  %v2611 = vpop.f32.mrb[0].mxu0
  %v2612 = vpop.f32.mrb[0].mxu0
  %2613 = vdwg.mxu0
  %2614 = vmatprep.subr.bf16.mxu0 0
  %2615 = vmatpush1.bf16.msra.mxu0 %v2462
  %2616 = vmatprep.subr.bf16.mxu0 0
  %2617 = vmatpush1.bf16.msra.mxu0 %v2463
  %2618 = vmatprep.subr.bf16.mxu0 0
  %2619 = vmatpush1.bf16.msra.mxu0 %v2464
  %2620 = vmatprep.subr.bf16.mxu0 0
  %2621 = vmatpush1.bf16.msra.mxu0 %v2465
  %2622 = vmatprep.subr.bf16.mxu0 0
  %2623 = vmatpush1.bf16.msra.mxu0 %v2466
  %2624 = vmatprep.subr.bf16.mxu0 0
  %2625 = vmatpush1.bf16.msra.mxu0 %v2467
  %2626 = vmatprep.subr.bf16.mxu0 0
  %2627 = vmatpush1.bf16.msra.mxu0 %v2468
  %2628 = vmatprep.subr.bf16.mxu0 0
  %2629 = vmatpush1.bf16.msra.mxu0 %v2469
  %2630 = vmatprep.subr.bf16.mxu0 0
  %2631 = vmatpush1.bf16.msra.mxu0 %v2470
  %2632 = vmatprep.subr.bf16.mxu0 0
  %2633 = vmatpush1.bf16.msra.mxu0 %v2471
  %2634 = vmatprep.subr.bf16.mxu0 0
  %2635 = vmatpush1.bf16.msra.mxu0 %v2472
  %2636 = vmatprep.subr.bf16.mxu0 0
  %2637 = vmatpush1.bf16.msra.mxu0 %v2473
  %2638 = vmatprep.subr.bf16.mxu0 0
  %2639 = vmatpush1.bf16.msra.mxu0 %v2474
  %2640 = vmatprep.subr.bf16.mxu0 0
  %2641 = vmatpush1.bf16.msra.mxu0 %v2475
  %2642 = vmatprep.subr.bf16.mxu0 0
  %2643 = vmatpush1.bf16.msra.mxu0 %v2476
  %2644 = vmatprep.subr.bf16.mxu0 0
  %2645 = vmatpush1.bf16.msra.mxu0 %v2477
  %2646 = vmatprep.mubr.bf16.mxu0 %v2050
  %2647 = vmatmul.mubr.bf16.gmra.mrb[0].mxu0 %v2049
  %v2648 = vpop.f32.mrb[0].mxu0
  %v2649 = vadd.f32 %v2609, %v2648
  %v2650 = vpop.f32.mrb[0].mxu0
  %v2651 = vpop.f32.mrb[0].mxu0
  %v2652 = vpop.f32.mrb[0].mxu0
  %2653 = vdwg.mxu0
  %2654 = vmatprep.subr.bf16.mxu0 0
  %2655 = vmatpush1.bf16.msra.mxu0 %v2478
  %2656 = vmatprep.subr.bf16.mxu0 0
  %2657 = vmatpush1.bf16.msra.mxu0 %v2479
  %2658 = vmatprep.subr.bf16.mxu0 0
  %2659 = vmatpush1.bf16.msra.mxu0 %v2480
  %2660 = vmatprep.subr.bf16.mxu0 0
  %2661 = vmatpush1.bf16.msra.mxu0 %v2481
  %2662 = vmatprep.subr.bf16.mxu0 0
  %2663 = vmatpush1.bf16.msra.mxu0 %v2482
  %2664 = vmatprep.subr.bf16.mxu0 0
  %2665 = vmatpush1.bf16.msra.mxu0 %v2483
  %2666 = vmatprep.subr.bf16.mxu0 0
  %2667 = vmatpush1.bf16.msra.mxu0 %v2484
  %2668 = vmatprep.subr.bf16.mxu0 0
  %2669 = vmatpush1.bf16.msra.mxu0 %v2485
  %2670 = vmatprep.subr.bf16.mxu0 0
  %2671 = vmatpush1.bf16.msra.mxu0 %v2486
  %2672 = vmatprep.subr.bf16.mxu0 0
  %2673 = vmatpush1.bf16.msra.mxu0 %v2487
  %2674 = vmatprep.subr.bf16.mxu0 0
  %2675 = vmatpush1.bf16.msra.mxu0 %v2488
  %2676 = vmatprep.subr.bf16.mxu0 0
  %2677 = vmatpush1.bf16.msra.mxu0 %v2489
  %2678 = vmatprep.subr.bf16.mxu0 0
  %2679 = vmatpush1.bf16.msra.mxu0 %v2490
  %2680 = vmatprep.subr.bf16.mxu0 0
  %2681 = vmatpush1.bf16.msra.mxu0 %v2491
  %2682 = vmatprep.subr.bf16.mxu0 0
  %2683 = vmatpush1.bf16.msra.mxu0 %v2492
  %2684 = vmatprep.subr.bf16.mxu0 0
  %2685 = vmatpush1.bf16.msra.mxu0 %v2493
  %2686 = vmatprep.mubr.bf16.mxu0 %v2052
  %2687 = vmatmul.mubr.bf16.gmra.mrb[0].mxu0 %v2051
  %v2688 = vpop.f32.mrb[0].mxu0
  %v2689 = vadd.f32 %v2649, %v2688
  %v2690 = vpop.f32.mrb[0].mxu0
  %v2691 = vpop.f32.mrb[0].mxu0
  %v2692 = vpop.f32.mrb[0].mxu0
  %2693 = vdwg.mxu0
  %2694 = vmatprep.subr.bf16.mxu0 0
  %2695 = vmatpush1.bf16.msra.mxu0 %v2494
  %2696 = vmatprep.subr.bf16.mxu0 0
  %2697 = vmatpush1.bf16.msra.mxu0 %v2495
  %2698 = vmatprep.subr.bf16.mxu0 0
  %2699 = vmatpush1.bf16.msra.mxu0 %v2496
  %2700 = vmatprep.subr.bf16.mxu0 0
  %2701 = vmatpush1.bf16.msra.mxu0 %v2497
  %2702 = vmatprep.subr.bf16.mxu0 0
  %2703 = vmatpush1.bf16.msra.mxu0 %v2498
  %2704 = vmatprep.subr.bf16.mxu0 0
  %2705 = vmatpush1.bf16.msra.mxu0 %v2499
  %2706 = vmatprep.subr.bf16.mxu0 0
  %2707 = vmatpush1.bf16.msra.mxu0 %v2500
  %2708 = vmatprep.subr.bf16.mxu0 0
  %2709 = vmatpush1.bf16.msra.mxu0 %v2501
  %2710 = vmatprep.subr.bf16.mxu0 0
  %2711 = vmatpush1.bf16.msra.mxu0 %v2502
  %2712 = vmatprep.subr.bf16.mxu0 0
  %2713 = vmatpush1.bf16.msra.mxu0 %v2503
  %2714 = vmatprep.subr.bf16.mxu0 0
  %2715 = vmatpush1.bf16.msra.mxu0 %v2504
  %2716 = vmatprep.subr.bf16.mxu0 0
  %2717 = vmatpush1.bf16.msra.mxu0 %v2505
  %2718 = vmatprep.subr.bf16.mxu0 0
  %2719 = vmatpush1.bf16.msra.mxu0 %v2506
  %2720 = vmatprep.subr.bf16.mxu0 0
  %2721 = vmatpush1.bf16.msra.mxu0 %v2507
  %2722 = vmatprep.subr.bf16.mxu0 0
  %2723 = vmatpush1.bf16.msra.mxu0 %v2508
  %2724 = vmatprep.subr.bf16.mxu0 0
  %2725 = vmatpush1.bf16.msra.mxu0 %v2509
  %2726 = vmatprep.mubr.bf16.mxu0 %v2054
  %2727 = vmatmul.mubr.bf16.gmra.mrb[0].mxu0 %v2053
  %v2728 = vpop.f32.mrb[0].mxu0
  %v2729 = vadd.f32 %v2689, %v2728
  %v2730 = vpop.f32.mrb[0].mxu0
  %v2731 = vpop.f32.mrb[0].mxu0
  %v2732 = vpop.f32.mrb[0].mxu0
  %2733 = vdwg.mxu0
  %v2734 = vlaneseq
  %v2735 = vand.u32 %v2734, 127
  %vm2736 = vcmp.lt.s32.totalorder %v2735, 4
  %v2737 = vsel %vm2736, %v2729, 0.0
  %2738 = vadd.xlane.f32.xlu0 %v2737
  %v2739 = vpop.xlane.xlu0 %2738
  %vm2740 = vcmp.eq.s32.totalorder %v2735, 4
  %v2741 = vsel %vm2740, %v2729, 0.0
  %2742 = vadd.xlane.f32.xlu0 %v2741
  %v2743 = vpop.xlane.xlu0 %2742
  %v2744 = vadd.f32 %v2729, %v2743
  %v2745 = vmul.f32 %v2739, 0.25
  %v2746 = vsub.f32 %v2744, %v2745
  %2747 = vst [vmem:[%s10] sm:$0xff] %v2746
  // Predicated region
  $region42: #{dueling_dqn_forward.3} parent=0 // pred_check
    _
  $region43: #{dueling_dqn_forward.3} parent=0 // pred_check_branch
    %2749 = sbr.rel (0) target = $region45
  $region44: #{dueling_dqn_forward.3} parent=0 // pred_region
    _
  $region45: #{dueling_dqn_forward.3} parent=0 // pred_fallthru
    _
  // Predicated region
  $region46: #{dueling_dqn_forward.3} parent=0 // pred_check
    _
  $region47: #{dueling_dqn_forward.3} parent=0 // pred_check_branch
    %2751 = sbr.rel (0) target = $region49
  $region48: #{dueling_dqn_forward.3} parent=0 // pred_region
    _
  $region49: #{dueling_dqn_forward.3} parent=0 // pred_fallthru
    _

</llo_original>
